<compile_context>
chip_gen: v5e
topology: v5e:2x2
jax: 0.10.0
libtpu: 0.0.40
codegen_flags: <defaults>
</compile_context>

<pallas_src>
import numpy as np
import jax
import jax.numpy as jnp
from jax import lax
from jax.experimental import pallas as pl
from jax.experimental.pallas import tpu as pltpu


# ----------------------------------------------------------------------------
# Kernel: fused backbone  conv3x3+ReLU -> conv3x3+ReLU -> global-avg-pool
# grid = (n_backbones, batch_blocks); activations live in lane-dense (rows, W*C) layout.
# ----------------------------------------------------------------------------

def backbone_kernel(x_ref, w1_ref, b1_ref, w2_ref, b2_ref, pool_ref, feat_ref,
                    xp_ref, hp_ref):
    bB, Hp2, L0 = xp_ref.shape          # L0 = W*Cin
    H = Hp2 - 2
    L1 = hp_ref.shape[-1]               # L1 = W*C1
    L2 = w2_ref.shape[-1]               # L2 = W*Cout
    Cout = pool_ref.shape[-1]

    # ---- conv1: 'same' pad in H via halo-only zeroed VMEM scratch ----
    halo0 = jnp.zeros((bB, 1, L0), xp_ref.dtype)
    xp_ref[:, 0:1, :] = halo0
    xp_ref[:, H + 1:H + 2, :] = halo0
    xp_ref[:, 1:H + 1, :] = x_ref[...]           # interior written exactly once

    xp = xp_ref[...]
    acc1 = jnp.zeros((bB * H, L1), jnp.float32)
    for kh in range(3):                          # 3 accumulated MXU matmuls, no im2col tensor
        tap = xp[:, kh:kh + H, :].reshape(bB * H, L0)
        acc1 = acc1 + jnp.dot(tap, w1_ref[kh], preferred_element_type=jnp.float32)
    h1 = jnp.maximum(acc1 + b1_ref[...], 0.0)    # (bB*H, W*C1) f32, bias+ReLU epilogue

    # ---- conv2 ----
    halo1 = jnp.zeros((bB, 1, L1), hp_ref.dtype)
    hp_ref[:, 0:1, :] = halo1
    hp_ref[:, H + 1:H + 2, :] = halo1
    hp_ref[:, 1:H + 1, :] = h1.astype(hp_ref.dtype).reshape(bB, H, L1)

    hp = hp_ref[...]
    acc2 = jnp.zeros((bB * H, L2), jnp.float32)
    for kh in range(3):
        tap = hp[:, kh:kh + H, :].reshape(bB * H, L1)
        acc2 = acc2 + jnp.dot(tap, w2_ref[kh], preferred_element_type=jnp.float32)
    h2 = jnp.maximum(acc2 + b2_ref[...], 0.0)    # (bB*H, W*Cout) f32

    # ---- global average pool fused into the epilogue (h2 never leaves VMEM) ----
    pooled = jnp.dot(h2, pool_ref[...], preferred_element_type=jnp.float32)  # (bB*H, Cout)
    feat_ref[...] = jnp.sum(pooled.reshape(bB, H, Cout), axis=1)             # (bB, Cout)


# ----------------------------------------------------------------------------
# Forward wrapper (1 pallas_call; the tiny fc / aux_fc heads run in XLA in the same jit)
# ----------------------------------------------------------------------------

def dernet_forward(kp, x_nchw):
    B, Cin, H, W = x_nchw.shape
    # NCHW -> lane-dense (B, H, W*Cin) bf16 feed (pixel-major, channel-minor lanes).
    x = jnp.transpose(x_nchw, (0, 2, 3, 1)).astype(jnp.bfloat16).reshape(B, H, W * Cin)

    NB = kp["w1"].shape[0]
    L0 = kp["w1"].shape[2]            # W*Cin
    L1 = kp["w1"].shape[3]            # W*C1
    L2 = kp["w2"].shape[3]            # W*Cout
    Cout = kp["pool"].shape[1]

    bB = B if B <= 8 else 8           # batch block: keeps VMEM bounded as B grows
    nb_b = pl.cdiv(B, bB)

    feats = pl.pallas_call(
        backbone_kernel,
        out_shape=jax.ShapeDtypeStruct((NB, B, Cout), jnp.float32),
        grid_spec=pltpu.PrefetchScalarGridSpec(
            num_scalar_prefetch=0,
            grid=(NB, nb_b),                                   # batch is the inner axis:
            in_specs=[                                         # weights re-DMA only on n change
                pl.BlockSpec((bB, H, L0), lambda n, b: (b, 0, 0)),          # x (shared)
                pl.BlockSpec((None, 3, L0, L1), lambda n, b: (n, 0, 0, 0)),  # banded w1
                pl.BlockSpec((None, 1, L1), lambda n, b: (n, 0, 0)),         # b1 row
                pl.BlockSpec((None, 3, L1, L2), lambda n, b: (n, 0, 0, 0)),  # banded w2
                pl.BlockSpec((None, 1, L2), lambda n, b: (n, 0, 0)),         # b2 row
                pl.BlockSpec((L2, Cout), lambda n, b: (0, 0)),               # GAP pool matrix
            ],
            out_specs=pl.BlockSpec((None, bB, Cout), lambda n, b: (n, b, 0)),
            scratch_shapes=[
                pltpu.VMEM((bB, H + 2, L0), jnp.bfloat16),     # H-padded conv1 input
                pltpu.VMEM((bB, H + 2, L1), jnp.bfloat16),     # H-padded conv2 input
            ]),
        # NOTE: total VMEM footprint here is ~1.5 MiB, far under the default scoped limit;
        # set vmem_limit_bytes explicitly once channel counts / spatial sizes grow.
        compiler_params=pltpu.CompilerParams(
            dimension_semantics=("parallel", "parallel")),
    )(x, kp["w1"], kp["b1"], kp["w2"], kp["b2"], kp["pool"])

    # Feature concat is a free relabeling of a tiny (NB, B, Cout) tensor.
    features = jnp.transpose(feats, (1, 0, 2)).reshape(B, NB * Cout)

    # Heads: (B, 32)x(32, 10) and (B, 16)x(16, 6) — per review, too small for a pallas_call.
    f_bf = features.astype(jnp.bfloat16)
    logits = jnp.dot(f_bf, kp["fc_wt"], preferred_element_type=jnp.float32) + kp["fc_b"]
    aux_in = kp["aux_wt"].shape[0]
    aux_logits = (jnp.dot(f_bf[:, -aux_in:], kp["aux_wt"],
                          preferred_element_type=jnp.float32) + kp["aux_b"])

    return {"logits": logits, "aux_logits": aux_logits, "features": features}


_dernet_forward_jit = jax.jit(dernet_forward)


class DERNetPallas:
    """Mirrors DERNet.forward:
         features   = cat([backbone(x)['features'] for backbone in backbones], 1)
         logits     = fc(features)['logits']
         aux_logits = aux_fc(features[:, -out_dim:])['logits']
    """

    def __init__(self, params, input_hw=(16, 16)):
        self.kernel_params = prepare_kernel_params(params, *input_hw)

    def __call__(self, x_nchw):
        return _dernet_forward_jit(self.kernel_params, x_nchw)

    # TODO(synk): update_fc / weight_align / load_checkpoint / freeze are training-time /
    # checkpoint utilities with no kernel-side forward semantics; not implemented.


# ----------------------------------------------------------------------------
# Parameters: PyTorch-layout f32 params + one-time kernel layout/dtype prep
# ----------------------------------------------------------------------------

def make_params(key, cin=4, c1=8, out_dim=16, n_backbones=2,
                nb_classes=10, new_task_size=5):
    keys = iter(jax.random.split(key, 32))

    def init(shape, fan_in):
        return (jax.random.normal(next(keys), shape, jnp.float32)
                / jnp.sqrt(jnp.float32(fan_in)))

    backbones = []
    for _ in range(n_backbones):
        backbones.append(dict(
            w1=init((3, 3, cin, c1), 9 * cin),          # HWIO
            b1=init((c1,), cin),
            w2=init((3, 3, c1, out_dim), 9 * c1),
            b2=init((out_dim,), c1),
        ))
    feature_dim = out_dim * n_backbones
    return dict(
        backbones=backbones,
        out_dim=out_dim,
        fc_w=init((nb_classes, feature_dim), feature_dim),    # SimpleLinear(feature_dim, nb_classes)
        fc_b=init((nb_classes,), feature_dim),
        aux_w=init((new_task_size + 1, out_dim), out_dim),    # SimpleLinear(out_dim, new_task_size+1)
        aux_b=init((new_task_size + 1,), out_dim),
    )


def _banded_conv_weight(w_hwio, W):
    """Fold the kw taps + 'same' W-padding of a 3x3 conv into 3 banded matrices.

    Returns band[kh] of shape (W*Cin, W*Cout) with
      band[kh][(j+kw-1)*Cin + ci, j*Cout + co] = w[kh, kw, ci, co]   for 0 <= j+kw-1 < W,
    matching the lane-dense (pixel-major, channel-minor) activation layout."""
    Cin, Cout = w_hwio.shape[2], w_hwio.shape[3]
    band = np.zeros((3, W * Cin, W * Cout), np.float32)
    for kh in range(3):
        for kw in range(3):
            for j in range(W):
                s = j + kw - 1
                if 0 <= s < W:
                    band[kh, s * Cin:(s + 1) * Cin, j * Cout:(j + 1) * Cout] = w_hwio[kh, kw]
    return band


def prepare_kernel_params(p, H, W):
    """One-time layout prep: banded bf16 conv weights, lane-tiled f32 bias rows,
    the GAP pooling matrix, and (In, Out) bf16 head weights."""
    w1_bands, w2_bands, b1_rows, b2_rows = [], [], [], []
    for bp in p["backbones"]:
        w1_bands.append(_banded_conv_weight(np.asarray(bp["w1"], np.float32), W))
        w2_bands.append(_banded_conv_weight(np.asarray(bp["w2"], np.float32), W))
        b1_rows.append(np.tile(np.asarray(bp["b1"], np.float32), W)[None, :])
        b2_rows.append(np.tile(np.asarray(bp["b2"], np.float32), W)[None, :])

    out_dim = p["out_dim"]
    pool = np.zeros((W * out_dim, out_dim), np.float32)
    for w in range(W):
        pool[w * out_dim + np.arange(out_dim), np.arange(out_dim)] = 1.0 / (H * W)

    return dict(
        w1=jnp.asarray(np.stack(w1_bands)).astype(jnp.bfloat16),   # (NB, 3, W*Cin, W*C1)
        b1=jnp.asarray(np.stack(b1_rows)),                          # (NB, 1, W*C1)  f32
        w2=jnp.asarray(np.stack(w2_bands)).astype(jnp.bfloat16),   # (NB, 3, W*C1, W*Cout)
        b2=jnp.asarray(np.stack(b2_rows)),                          # (NB, 1, W*Cout) f32
        pool=jnp.asarray(pool),                                     # (W*Cout, Cout)  f32
        fc_wt=jnp.transpose(p["fc_w"]).astype(jnp.bfloat16),
        fc_b=p["fc_b"].reshape(1, -1),
        aux_wt=jnp.transpose(p["aux_w"]).astype(jnp.bfloat16),
        aux_b=p["aux_b"].reshape(1, -1),
    )


# ----------------------------------------------------------------------------
# Pure-JAX reference with the same bf16 quantization points (for verification)
# ----------------------------------------------------------------------------

def ref_forward(params, x_nchw):
    x = jnp.transpose(x_nchw, (0, 2, 3, 1)).astype(jnp.bfloat16)
    dn = ("NHWC", "HWIO", "NHWC")
    feats = []
    for bp in params["backbones"]:
        h = lax.conv_general_dilated(x, bp["w1"].astype(jnp.bfloat16), (1, 1), "SAME",
                                     dimension_numbers=dn,
                                     preferred_element_type=jnp.float32) + bp["b1"]
        h = jnp.maximum(h, 0.0).astype(jnp.bfloat16)
        h = lax.conv_general_dilated(h, bp["w2"].astype(jnp.bfloat16), (1, 1), "SAME",
                                     dimension_numbers=dn,
                                     preferred_element_type=jnp.float32) + bp["b2"]
        h = jnp.maximum(h, 0.0)
        feats.append(jnp.mean(h, axis=(1, 2)))
    features = jnp.concatenate(feats, axis=1)
    logits = jnp.dot(features.astype(jnp.bfloat16),
                     params["fc_w"].T.astype(jnp.bfloat16),
                     preferred_element_type=jnp.float32) + params["fc_b"]
    aux = jnp.dot(features[:, -params["out_dim"]:].astype(jnp.bfloat16),
                  params["aux_w"].T.astype(jnp.bfloat16),
                  preferred_element_type=jnp.float32) + params["aux_b"]
    return {"logits": logits, "aux_logits": aux, "features": features}


if __name__ == "__main__":
    key = jax.random.PRNGKey(0)
    pkey, xkey = jax.random.split(key)

    B, C, H, W = 2, 4, 16, 16
    x = jax.random.normal(xkey, (B, C, H, W), jnp.float32)     # NCHW, like PyTorch

    params = make_params(pkey, cin=C)
    net = DERNetPallas(params, input_hw=(H, W))

    out = net(x)
    jax.block_until_ready(out["logits"])
    jax.block_until_ready(out["aux_logits"])
    jax.block_until_ready(out["features"])

    ref = ref_forward(params, x)
    for k in ("features", "logits", "aux_logits"):
        assert out[k].shape == ref[k].shape, (k, out[k].shape, ref[k].shape)
        assert jnp.allclose(out[k], ref[k], atol=5e-3, rtol=5e-3), (
            k, float(jnp.max(jnp.abs(out[k] - ref[k]))))

    print("KERNEL_OK")
</pallas_src>

<mosaic_0001>
module attributes {stable_mosaic.version = 11 : i64} {
  func.func @backbone_kernel(%arg0: i32, %arg1: i32, %arg2: memref<2x16x64xbf16, #tpu.memory_space<vmem>>, %arg3: memref<1x3x64x128xbf16, #tpu.memory_space<vmem>>, %arg4: memref<1x1x128xf32, #tpu.memory_space<vmem>>, %arg5: memref<1x3x128x256xbf16, #tpu.memory_space<vmem>>, %arg6: memref<1x1x256xf32, #tpu.memory_space<vmem>>, %arg7: memref<256x16xf32, #tpu.memory_space<vmem>>, %arg8: memref<1x2x16xf32, #tpu.memory_space<vmem>>, %arg9: memref<2x18x64xbf16, #tpu.memory_space<vmem>>, %arg10: memref<2x18x128xbf16, #tpu.memory_space<vmem>>) attributes {dimension_semantics = [#tpu.dimension_semantics<parallel>, #tpu.dimension_semantics<parallel>], iteration_bounds = array<i64: 2, 1>, scalar_prefetch = 0 : i64, scratch_operands = 2 : i64, tpu.core_type = #tpu.core_type<tc>, window_params = [{transform_indices = @transform_0, window_bounds = array<i64: 2, 16, 64>}, {transform_indices = @transform_1, window_bounds = array<i64: 1, 3, 64, 128>}, {transform_indices = @transform_2, window_bounds = array<i64: 1, 1, 128>}, {transform_indices = @transform_3, window_bounds = array<i64: 1, 3, 128, 256>}, {transform_indices = @transform_4, window_bounds = array<i64: 1, 1, 256>}, {pipeline_mode = #tpu.pipeline_mode<synchronous>, transform_indices = @transform_5, window_bounds = array<i64: 256, 16>}, {transform_indices = @transform_6, window_bounds = array<i64: 1, 2, 16>}]} {
    %cst = arith.constant 0.000000e+00 : bf16
    %0 = vector.broadcast %cst : bf16 to vector<2x1x64xbf16>
    %c0 = arith.constant 0 : index
    %c0_0 = arith.constant 0 : index
    %c0_1 = arith.constant 0 : index
    %1 = vector.load %arg9[%c0, %c0_0, %c0_1] : memref<2x18x64xbf16, #tpu.memory_space<vmem>>, vector<2x1x64xbf16>
    tpu.vector_store %arg9[%c0, %c0_0, %c0_1], %0 {strides = array<i32>} : memref<2x18x64xbf16, #tpu.memory_space<vmem>>, vector<2x1x64xbf16>,
    %c0_2 = arith.constant 0 : index
    %c17 = arith.constant 17 : index
    %c0_3 = arith.constant 0 : index
    %2 = vector.load %arg9[%c0_2, %c17, %c0_3] : memref<2x18x64xbf16, #tpu.memory_space<vmem>>, vector<2x1x64xbf16>
    tpu.vector_store %arg9[%c0_2, %c17, %c0_3], %0 {strides = array<i32>} : memref<2x18x64xbf16, #tpu.memory_space<vmem>>, vector<2x1x64xbf16>,
    %c0_4 = arith.constant 0 : index
    %c0_5 = arith.constant 0 : index
    %c0_6 = arith.constant 0 : index
    %3 = vector.load %arg2[%c0_4, %c0_5, %c0_6] : memref<2x16x64xbf16, #tpu.memory_space<vmem>>, vector<2x16x64xbf16>
    %c0_7 = arith.constant 0 : index
    %c1 = arith.constant 1 : index
    %c0_8 = arith.constant 0 : index
    %4 = vector.load %arg9[%c0_7, %c1, %c0_8] : memref<2x18x64xbf16, #tpu.memory_space<vmem>>, vector<2x16x64xbf16>
    tpu.vector_store %arg9[%c0_7, %c1, %c0_8], %3 {strides = array<i32>} : memref<2x18x64xbf16, #tpu.memory_space<vmem>>, vector<2x16x64xbf16>,
    %c0_9 = arith.constant 0 : index
    %c0_10 = arith.constant 0 : index
    %c0_11 = arith.constant 0 : index
    %5 = vector.load %arg9[%c0_9, %c0_10, %c0_11] : memref<2x18x64xbf16, #tpu.memory_space<vmem>>, vector<2x18x64xbf16>
    %cst_12 = arith.constant 0.000000e+00 : f32
    %6 = vector.broadcast %cst_12 : f32 to vector<32x128xf32>
    %7 = vector.extract_strided_slice %5 {offsets = [0, 0, 0], sizes = [2, 16, 64], strides = [1, 1, 1]} : vector<2x18x64xbf16> to vector<2x16x64xbf16>
    %8 = vector.shape_cast %7 : vector<2x16x64xbf16> to vector<32x64xbf16>
    %c0_13 = arith.constant 0 : index
    %c0_14 = arith.constant 0 : index
    %c0_15 = arith.constant 0 : index
    %c0_16 = arith.constant 0 : index
    %9 = vector.load %arg3[%c0_13, %c0_14, %c0_15, %c0_16] : memref<1x3x64x128xbf16, #tpu.memory_space<vmem>>, vector<1x1x64x128xbf16>
    %10 = vector.shape_cast %9 : vector<1x1x64x128xbf16> to vector<64x128xbf16>
    %cst_17 = arith.constant dense<0.000000e+00> : vector<32x128xf32>
    %11 = tpu.matmul %8, %10, %cst_17 {dimension_numbers = #tpu.dot_dimension_numbers<[1], [0], [0], [1], [0, 0, 1, 1], [], []>} : vector<32x64xbf16>, vector<64x128xbf16>, vector<32x128xf32> -> vector<32x128xf32>
    %12 = arith.addf %6, %11 : vector<32x128xf32>
    %13 = vector.extract_strided_slice %5 {offsets = [0, 1, 0], sizes = [2, 16, 64], strides = [1, 1, 1]} : vector<2x18x64xbf16> to vector<2x16x64xbf16>
    %14 = vector.shape_cast %13 : vector<2x16x64xbf16> to vector<32x64xbf16>
    %c0_18 = arith.constant 0 : index
    %c1_19 = arith.constant 1 : index
    %c0_20 = arith.constant 0 : index
    %c0_21 = arith.constant 0 : index
    %15 = vector.load %arg3[%c0_18, %c1_19, %c0_20, %c0_21] : memref<1x3x64x128xbf16, #tpu.memory_space<vmem>>, vector<1x1x64x128xbf16>
    %16 = vector.shape_cast %15 : vector<1x1x64x128xbf16> to vector<64x128xbf16>
    %cst_22 = arith.constant dense<0.000000e+00> : vector<32x128xf32>
    %17 = tpu.matmul %14, %16, %cst_22 {dimension_numbers = #tpu.dot_dimension_numbers<[1], [0], [0], [1], [0, 0, 1, 1], [], []>} : vector<32x64xbf16>, vector<64x128xbf16>, vector<32x128xf32> -> vector<32x128xf32>
    %18 = arith.addf %12, %17 : vector<32x128xf32>
    %19 = vector.extract_strided_slice %5 {offsets = [0, 2, 0], sizes = [2, 16, 64], strides = [1, 1, 1]} : vector<2x18x64xbf16> to vector<2x16x64xbf16>
    %20 = vector.shape_cast %19 : vector<2x16x64xbf16> to vector<32x64xbf16>
    %c0_23 = arith.constant 0 : index
    %c2 = arith.constant 2 : index
    %c0_24 = arith.constant 0 : index
    %c0_25 = arith.constant 0 : index
    %21 = vector.load %arg3[%c0_23, %c2, %c0_24, %c0_25] : memref<1x3x64x128xbf16, #tpu.memory_space<vmem>>, vector<1x1x64x128xbf16>
    %22 = vector.shape_cast %21 : vector<1x1x64x128xbf16> to vector<64x128xbf16>
    %cst_26 = arith.constant dense<0.000000e+00> : vector<32x128xf32>
    %23 = tpu.matmul %20, %22, %cst_26 {dimension_numbers = #tpu.dot_dimension_numbers<[1], [0], [0], [1], [0, 0, 1, 1], [], []>} : vector<32x64xbf16>, vector<64x128xbf16>, vector<32x128xf32> -> vector<32x128xf32>
    %24 = arith.addf %18, %23 : vector<32x128xf32>
    %c0_27 = arith.constant 0 : index
    %c0_28 = arith.constant 0 : index
    %c0_29 = arith.constant 0 : index
    %25 = vector.load %arg4[%c0_27, %c0_28, %c0_29] : memref<1x1x128xf32, #tpu.memory_space<vmem>>, vector<1x1x128xf32>
    %26 = vector.shape_cast %25 : vector<1x1x128xf32> to vector<1x128xf32>
    %27 = vector.broadcast %26 : vector<1x128xf32> to vector<32x128xf32>
    %28 = arith.addf %24, %27 : vector<32x128xf32>
    %cst_30 = arith.constant 0.000000e+00 : f32
    %29 = vector.broadcast %cst_30 : f32 to vector<32x128xf32>
    %30 = arith.maximumf %28, %29 : vector<32x128xf32>
    %cst_31 = arith.constant 0.000000e+00 : bf16
    %31 = vector.broadcast %cst_31 : bf16 to vector<2x1x128xbf16>
    %c0_32 = arith.constant 0 : index
    %c0_33 = arith.constant 0 : index
    %c0_34 = arith.constant 0 : index
    %32 = vector.load %arg10[%c0_32, %c0_33, %c0_34] : memref<2x18x128xbf16, #tpu.memory_space<vmem>>, vector<2x1x128xbf16>
    tpu.vector_store %arg10[%c0_32, %c0_33, %c0_34], %31 {strides = array<i32>} : memref<2x18x128xbf16, #tpu.memory_space<vmem>>, vector<2x1x128xbf16>,
    %c0_35 = arith.constant 0 : index
    %c17_36 = arith.constant 17 : index
    %c0_37 = arith.constant 0 : index
    %33 = vector.load %arg10[%c0_35, %c17_36, %c0_37] : memref<2x18x128xbf16, #tpu.memory_space<vmem>>, vector<2x1x128xbf16>
    tpu.vector_store %arg10[%c0_35, %c17_36, %c0_37], %31 {strides = array<i32>} : memref<2x18x128xbf16, #tpu.memory_space<vmem>>, vector<2x1x128xbf16>,
    %34 = arith.truncf %30 : vector<32x128xf32> to vector<32x128xbf16>
    %35 = vector.shape_cast %34 : vector<32x128xbf16> to vector<2x16x128xbf16>
    %c0_38 = arith.constant 0 : index
    %c1_39 = arith.constant 1 : index
    %c0_40 = arith.constant 0 : index
    %36 = vector.load %arg10[%c0_38, %c1_39, %c0_40] : memref<2x18x128xbf16, #tpu.memory_space<vmem>>, vector<2x16x128xbf16>
    tpu.vector_store %arg10[%c0_38, %c1_39, %c0_40], %35 {strides = array<i32>} : memref<2x18x128xbf16, #tpu.memory_space<vmem>>, vector<2x16x128xbf16>,
    %c0_41 = arith.constant 0 : index
    %c0_42 = arith.constant 0 : index
    %c0_43 = arith.constant 0 : index
    %37 = vector.load %arg10[%c0_41, %c0_42, %c0_43] : memref<2x18x128xbf16, #tpu.memory_space<vmem>>, vector<2x18x128xbf16>
    %cst_44 = arith.constant 0.000000e+00 : f32
    %38 = vector.broadcast %cst_44 : f32 to vector<32x256xf32>
    %39 = vector.extract_strided_slice %37 {offsets = [0, 0, 0], sizes = [2, 16, 128], strides = [1, 1, 1]} : vector<2x18x128xbf16> to vector<2x16x128xbf16>
    %40 = vector.shape_cast %39 : vector<2x16x128xbf16> to vector<32x128xbf16>
    %c0_45 = arith.constant 0 : index
    %c0_46 = arith.constant 0 : index
    %c0_47 = arith.constant 0 : index
    %c0_48 = arith.constant 0 : index
    %41 = vector.load %arg5[%c0_45, %c0_46, %c0_47, %c0_48] : memref<1x3x128x256xbf16, #tpu.memory_space<vmem>>, vector<1x1x128x256xbf16>
    %42 = vector.shape_cast %41 : vector<1x1x128x256xbf16> to vector<128x256xbf16>
    %cst_49 = arith.constant dense<0.000000e+00> : vector<32x256xf32>
    %43 = tpu.matmul %40, %42, %cst_49 {dimension_numbers = #tpu.dot_dimension_numbers<[1], [0], [0], [1], [0, 0, 1, 1], [], []>} : vector<32x128xbf16>, vector<128x256xbf16>, vector<32x256xf32> -> vector<32x256xf32>
    %44 = arith.addf %38, %43 : vector<32x256xf32>
    %45 = vector.extract_strided_slice %37 {offsets = [0, 1, 0], sizes = [2, 16, 128], strides = [1, 1, 1]} : vector<2x18x128xbf16> to vector<2x16x128xbf16>
    %46 = vector.shape_cast %45 : vector<2x16x128xbf16> to vector<32x128xbf16>
    %c0_50 = arith.constant 0 : index
    %c1_51 = arith.constant 1 : index
    %c0_52 = arith.constant 0 : index
    %c0_53 = arith.constant 0 : index
    %47 = vector.load %arg5[%c0_50, %c1_51, %c0_52, %c0_53] : memref<1x3x128x256xbf16, #tpu.memory_space<vmem>>, vector<1x1x128x256xbf16>
    %48 = vector.shape_cast %47 : vector<1x1x128x256xbf16> to vector<128x256xbf16>
    %cst_54 = arith.constant dense<0.000000e+00> : vector<32x256xf32>
    %49 = tpu.matmul %46, %48, %cst_54 {dimension_numbers = #tpu.dot_dimension_numbers<[1], [0], [0], [1], [0, 0, 1, 1], [], []>} : vector<32x128xbf16>, vector<128x256xbf16>, vector<32x256xf32> -> vector<32x256xf32>
    %50 = arith.addf %44, %49 : vector<32x256xf32>
    %51 = vector.extract_strided_slice %37 {offsets = [0, 2, 0], sizes = [2, 16, 128], strides = [1, 1, 1]} : vector<2x18x128xbf16> to vector<2x16x128xbf16>
    %52 = vector.shape_cast %51 : vector<2x16x128xbf16> to vector<32x128xbf16>
    %c0_55 = arith.constant 0 : index
    %c2_56 = arith.constant 2 : index
    %c0_57 = arith.constant 0 : index
    %c0_58 = arith.constant 0 : index
    %53 = vector.load %arg5[%c0_55, %c2_56, %c0_57, %c0_58] : memref<1x3x128x256xbf16, #tpu.memory_space<vmem>>, vector<1x1x128x256xbf16>
    %54 = vector.shape_cast %53 : vector<1x1x128x256xbf16> to vector<128x256xbf16>
    %cst_59 = arith.constant dense<0.000000e+00> : vector<32x256xf32>
    %55 = tpu.matmul %52, %54, %cst_59 {dimension_numbers = #tpu.dot_dimension_numbers<[1], [0], [0], [1], [0, 0, 1, 1], [], []>} : vector<32x128xbf16>, vector<128x256xbf16>, vector<32x256xf32> -> vector<32x256xf32>
    %56 = arith.addf %50, %55 : vector<32x256xf32>
    %c0_60 = arith.constant 0 : index
    %c0_61 = arith.constant 0 : index
    %c0_62 = arith.constant 0 : index
    %57 = vector.load %arg6[%c0_60, %c0_61, %c0_62] : memref<1x1x256xf32, #tpu.memory_space<vmem>>, vector<1x1x256xf32>
    %58 = vector.shape_cast %57 : vector<1x1x256xf32> to vector<1x256xf32>
    %59 = vector.broadcast %58 : vector<1x256xf32> to vector<32x256xf32>
    %60 = arith.addf %56, %59 : vector<32x256xf32>
    %cst_63 = arith.constant 0.000000e+00 : f32
    %61 = vector.broadcast %cst_63 : f32 to vector<32x256xf32>
    %62 = arith.maximumf %60, %61 : vector<32x256xf32>
    %c0_64 = arith.constant 0 : index
    %c0_65 = arith.constant 0 : index
    %63 = vector.load %arg7[%c0_64, %c0_65] : memref<256x16xf32, #tpu.memory_space<vmem>>, vector<256x16xf32>
    %cst_66 = arith.constant dense<0.000000e+00> : vector<32x16xf32>
    %64 = tpu.matmul %62, %63, %cst_66 {dimension_numbers = #tpu.dot_dimension_numbers<[1], [0], [0], [1], [0, 0, 1, 1], [], []>} : vector<32x256xf32>, vector<256x16xf32>, vector<32x16xf32> -> vector<32x16xf32>
    %65 = vector.shape_cast %64 : vector<32x16xf32> to vector<2x16x16xf32>
    %cst_67 = arith.constant dense<0.000000e+00> : vector<2x16xf32>
    %66 = vector.multi_reduction <add>, %65, %cst_67 [1] : vector<2x16x16xf32> to vector<2x16xf32>
    %c0_68 = arith.constant 0 : index
    %c0_69 = arith.constant 0 : index
    %c0_70 = arith.constant 0 : index
    %67 = vector.load %arg8[%c0_68, %c0_69, %c0_70] : memref<1x2x16xf32, #tpu.memory_space<vmem>>, vector<1x2x16xf32>
    %68 = vector.shape_cast %67 : vector<1x2x16xf32> to vector<2x16xf32>
    %69 = vector.shape_cast %66 : vector<2x16xf32> to vector<1x2x16xf32>
    tpu.vector_store %arg8[%c0_68, %c0_69, %c0_70], %69 {strides = array<i32>} : memref<1x2x16xf32, #tpu.memory_space<vmem>>, vector<1x2x16xf32>,
    return
  }
  func.func @transform_0(%arg0: i32, %arg1: i32) -> (i32, i32, i32) {
    %c0_i32 = arith.constant 0 : i32
    %c0_i32_0 = arith.constant 0 : i32
    %c0_i32_1 = arith.constant 0 : i32
    return %arg1, %c0_i32, %c0_i32_0 : i32, i32, i32
  }
  func.func @transform_1(%arg0: i32, %arg1: i32) -> (i32, i32, i32, i32) {
    %c0_i32 = arith.constant 0 : i32
    %c0_i32_0 = arith.constant 0 : i32
    %c0_i32_1 = arith.constant 0 : i32
    %c0_i32_2 = arith.constant 0 : i32
    return %arg0, %c0_i32, %c0_i32_0, %c0_i32_1 : i32, i32, i32, i32
  }
  func.func @transform_2(%arg0: i32, %arg1: i32) -> (i32, i32, i32) {
    %c0_i32 = arith.constant 0 : i32
    %c0_i32_0 = arith.constant 0 : i32
    %c0_i32_1 = arith.constant 0 : i32
    return %arg0, %c0_i32, %c0_i32_0 : i32, i32, i32
  }
  func.func @transform_3(%arg0: i32, %arg1: i32) -> (i32, i32, i32, i32) {
    %c0_i32 = arith.constant 0 : i32
    %c0_i32_0 = arith.constant 0 : i32
    %c0_i32_1 = arith.constant 0 : i32
    %c0_i32_2 = arith.constant 0 : i32
    return %arg0, %c0_i32, %c0_i32_0, %c0_i32_1 : i32, i32, i32, i32
  }
  func.func @transform_4(%arg0: i32, %arg1: i32) -> (i32, i32, i32) {
    %c0_i32 = arith.constant 0 : i32
    %c0_i32_0 = arith.constant 0 : i32
    %c0_i32_1 = arith.constant 0 : i32
    return %arg0, %c0_i32, %c0_i32_0 : i32, i32, i32
  }
  func.func @transform_5(%arg0: i32, %arg1: i32) -> (i32, i32) {
    %c0_i32 = arith.constant 0 : i32
    %c0_i32_0 = arith.constant 0 : i32
    %c0_i32_1 = arith.constant 0 : i32
    return %c0_i32, %c0_i32_0 : i32, i32
  }
  func.func @transform_6(%arg0: i32, %arg1: i32) -> (i32, i32, i32) {
    %c0_i32 = arith.constant 0 : i32
    %c0_i32_0 = arith.constant 0 : i32
    return %arg0, %arg1, %c0_i32 : i32, i32, i32
  }
}

</mosaic_0001>

<llo_original>
// kernel: dernet_forward.1
$region0: #{dernet_forward.1}
  #allocation0 [shape = 'u32[]', space=smem, size = 0x4, offset = 0x4, fixed_abs, tag = 'smem constant byte address 0x4 - core index']
  #allocation1 [shape = 'u32[72,128]{1,0:T(1,128)}', space=vmem, size = 0x9000, scoped, tag = 'internal scratch']
  #allocation2 [shape = 'bf16[2,18,64]{2,1,0:T(8,128)(2,1)}', space=vmem, size = 0x3000, scoped, tag = 'scratch operand']
  #allocation3 [shape = 'bf16[2,18,128]{2,1,0:T(8,128)(2,1)}', space=vmem, size = 0x3000, scoped, tag = 'scratch operand']
  %s0 = inlined_call_operand.vmem [shape: bf16[2,16,64], index: 0, kind: input, shape index: {}]
  %s1 = inlined_call_operand.vmem [shape: bf16[2,3,64,128], index: 1, kind: input, shape index: {}]
  %s2 = inlined_call_operand.vmem [shape: f32[2,1,128], index: 2, kind: input, shape index: {}]
  %s3 = inlined_call_operand.hbm [shape: bf16[2,3,128,256], index: 3, kind: input, shape index: {}]
  %s4 = inlined_call_operand.vmem [shape: f32[2,1,256], index: 4, kind: input, shape index: {}]
  %s5 = inlined_call_operand.vmem [shape: f32[256,16], index: 5, kind: input, shape index: {}]
  %s6 = inlined_call_operand.vmem [shape: f32[2,2,16], index: 6, kind: output, shape index: {}]
  %s7 = sld [smem:[#allocation0]]
  $region61: #{dernet_forward.1} parent=0
    _
  %s9 = ssub.s32 1, %s7
  %s10 = scalar_select 0, %s9, %s7
  $region1: #{dernet_forward.1} parent=0
    #allocation4 [shape = 'u8[393216]{0}', space=vmem, size = 0x60000, scoped, tag = 'input window, operand 3']
    #allocation5 [shape = 's32[2]{0}', space=sflag, size = 0x8, scoped, tag = 'scoped memory for dernet_forward.1']
    %11 = vsyncpa [#allocation5], 0
    %s12 = scalar_lea.sflag [#allocation5], 1
    %13 = vsyncpa %s12, 0
    loop: start=0, step=1, limit=4
    $region2: #{dernet_forward.1} parent=1 // loop_pre_header
      _
    $region3: #{dernet_forward.1} parent=1 // loop_header
      %s15 = sphi 0, %s19
      %p16 = scmp.ge.s32.totalorder %s15, 4
      %s22 = sphi 0, %s34
      %s23 = sphi 0, %s30
      %s24 = sphi 0, %s22
      %s25 = sphi 0, %s23
      %s26 = sphi 0, %s24
      %s27 = sphi 0, %s25
      %s37 = sphi 0, %s39
      %s40 = sphi 0, %s37
      %s41 = sphi 0, %s40
      %s57 = sphi 0, %s41
      %s63 = sphi 0, %s65
      %s66 = sphi 0, %s63
      %s67 = sphi 0, %s66
      %s83 = sphi 0, %s67
      %s89 = sphi 0, %s91
      %s92 = sphi 0, %s89
      %s93 = sphi 0, %s92
      %s109 = sphi 0, %s93
      %s115 = sphi 0, %s117
      %s118 = sphi 0, %s115
      %s119 = sphi 0, %s118
      %s135 = sphi 0, %s119
      %s141 = sphi 0, %s143
      %s144 = sphi 0, %s141
      %s145 = sphi 0, %s144
      %s161 = sphi 0, %s145
      %s165 = sphi 0, %s165
      %s167 = sphi 0, %s165
      %s168 = sphi 0, %s167
      %s182 = sphi 0, %s168
      %s190 = sphi 0, %s192
      %s193 = sphi 0, %s190
      %s194 = sphi 0, %s193
      %s210 = sphi 0, %s194
    $region4: #{dernet_forward.1} parent=1 // loop_header_branch
      %18 = sbr.rel (%p16) target = $region8
    $region5: #{dernet_forward.1} parent=1 // loop_body
      %s20 = ssub.s32 %s15, 1
      %s21 = ssub.s32 %s15, 2
      %s28 = sadd.s32 1, %s23
      %p29 = scmp.ge.s32.totalorder %s28, 1
      %s30 = scalar_select %p29, 0, %s28
      %s31 = sadd.s32 1, %s22
      %s32 = scalar_select %p29, %s31, %s22
      %p33 = scmp.ge.s32.totalorder %s32, 2
      %s34 = scalar_select %p33, 0, %s32
      %s35 = ssub.s32 %s23, %s30
      %p36 = scmp.eq.s32.totalorder %s35, 0
      %s38 = sadd.s32 %s37, 1
      %s39 = scalar_select %p36, %s37, %s38
      %p42 = pneg %p36
      %p43 = scmp.eq.s32.totalorder %s15, 1
      %p44 = por %p42, %p43
      %p45 = scmp.ne.s32.totalorder %s37, %s40
      %p46 = scmp.eq.s32.totalorder %s15, 0
      %p47 = por %p45, %p46
      %p48 = scmp.ne.s32.totalorder %s37, %s40
      %p49 = scmp.eq.s32.totalorder %s20, 1
      %p50 = por %p48, %p49
      %p51 = scmp.ne.s32.totalorder %s40, %s41
      %p52 = scmp.eq.s32.totalorder %s20, 0
      %p53 = por %p51, %p52
      %p54 = scmp.ne.s32.totalorder %s40, %s41
      %p55 = scmp.eq.s32.totalorder %s21, 1
      %p56 = por %p54, %p55
      %p58 = scmp.ne.s32.totalorder %s41, %s57
      %p59 = scmp.eq.s32.totalorder %s21, 0
      %p60 = por %p58, %p59
      %s61 = ssub.s32 %s22, %s34
      %p62 = scmp.eq.s32.totalorder %s61, 0
      %s64 = sadd.s32 %s63, 1
      %s65 = scalar_select %p62, %s63, %s64
      %p68 = pneg %p62
      %p69 = scmp.eq.s32.totalorder %s15, 1
      %p70 = por %p68, %p69
      %p71 = scmp.ne.s32.totalorder %s63, %s66
      %p72 = scmp.eq.s32.totalorder %s15, 0
      %p73 = por %p71, %p72
      %p74 = scmp.ne.s32.totalorder %s63, %s66
      %p75 = scmp.eq.s32.totalorder %s20, 1
      %p76 = por %p74, %p75
      %p77 = scmp.ne.s32.totalorder %s66, %s67
      %p78 = scmp.eq.s32.totalorder %s20, 0
      %p79 = por %p77, %p78
      %p80 = scmp.ne.s32.totalorder %s66, %s67
      %p81 = scmp.eq.s32.totalorder %s21, 1
      %p82 = por %p80, %p81
      %p84 = scmp.ne.s32.totalorder %s67, %s83
      %p85 = scmp.eq.s32.totalorder %s21, 0
      %p86 = por %p84, %p85
      %s87 = ssub.s32 %s22, %s34
      %p88 = scmp.eq.s32.totalorder %s87, 0
      %s90 = sadd.s32 %s89, 1
      %s91 = scalar_select %p88, %s89, %s90
      %p94 = pneg %p88
      %p95 = scmp.eq.s32.totalorder %s15, 1
      %p96 = por %p94, %p95
      %p97 = scmp.ne.s32.totalorder %s89, %s92
      %p98 = scmp.eq.s32.totalorder %s15, 0
      %p99 = por %p97, %p98
      %p100 = scmp.ne.s32.totalorder %s89, %s92
      %p101 = scmp.eq.s32.totalorder %s20, 1
      %p102 = por %p100, %p101
      %p103 = scmp.ne.s32.totalorder %s92, %s93
      %p104 = scmp.eq.s32.totalorder %s20, 0
      %p105 = por %p103, %p104
      %p106 = scmp.ne.s32.totalorder %s92, %s93
      %p107 = scmp.eq.s32.totalorder %s21, 1
      %p108 = por %p106, %p107
      %p110 = scmp.ne.s32.totalorder %s93, %s109
      %p111 = scmp.eq.s32.totalorder %s21, 0
      %p112 = por %p110, %p111
      %s113 = ssub.s32 %s22, %s34
      %p114 = scmp.eq.s32.totalorder %s113, 0
      %s116 = sadd.s32 %s115, 1
      %s117 = scalar_select %p114, %s115, %s116
      %p120 = pneg %p114
      %p121 = scmp.eq.s32.totalorder %s15, 1
      %p122 = por %p120, %p121
      %p123 = scmp.ne.s32.totalorder %s115, %s118
      %p124 = scmp.eq.s32.totalorder %s15, 0
      %p125 = por %p123, %p124
      %p126 = scmp.ne.s32.totalorder %s115, %s118
      %p127 = scmp.eq.s32.totalorder %s20, 1
      %p128 = por %p126, %p127
      %p129 = scmp.ne.s32.totalorder %s118, %s119
      %p130 = scmp.eq.s32.totalorder %s20, 0
      %p131 = por %p129, %p130
      %p132 = scmp.ne.s32.totalorder %s118, %s119
      %p133 = scmp.eq.s32.totalorder %s21, 1
      %p134 = por %p132, %p133
      %p136 = scmp.ne.s32.totalorder %s119, %s135
      %p137 = scmp.eq.s32.totalorder %s21, 0
      %p138 = por %p136, %p137
      %s139 = ssub.s32 %s22, %s34
      %p140 = scmp.eq.s32.totalorder %s139, 0
      %s142 = sadd.s32 %s141, 1
      %s143 = scalar_select %p140, %s141, %s142
      %p146 = pneg %p140
      %p147 = scmp.eq.s32.totalorder %s15, 1
      %p148 = por %p146, %p147
      %p149 = scmp.ne.s32.totalorder %s141, %s144
      %p150 = scmp.eq.s32.totalorder %s15, 0
      %p151 = por %p149, %p150
      %p152 = scmp.ne.s32.totalorder %s141, %s144
      %p153 = scmp.eq.s32.totalorder %s20, 1
      %p154 = por %p152, %p153
      %p155 = scmp.ne.s32.totalorder %s144, %s145
      %p156 = scmp.eq.s32.totalorder %s20, 0
      %p157 = por %p155, %p156
      %p158 = scmp.ne.s32.totalorder %s144, %s145
      %p159 = scmp.eq.s32.totalorder %s21, 1
      %p160 = por %p158, %p159
      %p162 = scmp.ne.s32.totalorder %s145, %s161
      %p163 = scmp.eq.s32.totalorder %s21, 0
      %p164 = por %p162, %p163
      %s166 = sadd.s32 %s165, 1
      %p169 = scmp.eq.s32.totalorder %s15, 1
      %p170 = scmp.ne.s32.totalorder %s165, %s167
      %p171 = scmp.eq.s32.totalorder %s15, 0
      %p172 = por %p170, %p171
      %p173 = scmp.ne.s32.totalorder %s165, %s167
      %p174 = scmp.eq.s32.totalorder %s20, 1
      %p175 = por %p173, %p174
      %p176 = scmp.ne.s32.totalorder %s167, %s168
      %p177 = scmp.eq.s32.totalorder %s20, 0
      %p178 = por %p176, %p177
      %p179 = scmp.ne.s32.totalorder %s167, %s168
      %p180 = scmp.eq.s32.totalorder %s21, 1
      %p181 = por %p179, %p180
      %p183 = scmp.ne.s32.totalorder %s168, %s182
      %p184 = scmp.eq.s32.totalorder %s21, 0
      %p185 = por %p183, %p184
      %s186 = ssub.s32 %s22, %s34
      %s187 = ssub.s32 %s23, %s30
      %s188 = sor.u32 %s186, %s187
      %p189 = scmp.eq.s32.totalorder %s188, 0
      %s191 = sadd.s32 %s190, 1
      %s192 = scalar_select %p189, %s190, %s191
      %p195 = pneg %p189
      %p196 = scmp.eq.s32.totalorder %s15, 1
      %p197 = por %p195, %p196
      %p198 = scmp.ne.s32.totalorder %s190, %s193
      %p199 = scmp.eq.s32.totalorder %s15, 0
      %p200 = por %p198, %p199
      %p201 = scmp.ne.s32.totalorder %s190, %s193
      %p202 = scmp.eq.s32.totalorder %s20, 1
      %p203 = por %p201, %p202
      %p204 = scmp.ne.s32.totalorder %s193, %s194
      %p205 = scmp.eq.s32.totalorder %s20, 0
      %p206 = por %p204, %p205
      %p207 = scmp.ne.s32.totalorder %s193, %s194
      %p208 = scmp.eq.s32.totalorder %s21, 1
      %p209 = por %p207, %p208
      %p211 = scmp.ne.s32.totalorder %s194, %s210
      %p212 = scmp.eq.s32.totalorder %s21, 0
      %p213 = por %p211, %p212
      %p214 = scmp.le.s32.totalorder 1, %s15
      %p215 = scmp.lt.s32.totalorder %s15, 3
      %p216 = pnand %p214, %p215
      %p217 = pneg %p216
      // Predicated region
      $region9: #{dernet_forward.1} parent=5 // pred_check
        _
      $region10: #{dernet_forward.1} parent=5 // pred_check_branch
        %219 = sbr.rel (%p216) target = $region12
      $region11: #{dernet_forward.1} parent=5 // pred_region
        %s220 = ssub.s32 %s15, 1
        // Predicated region
        $region13: #{dernet_forward.1} parent=11 // pred_check
          %p221 = pneg %p53
        $region14: #{dernet_forward.1} parent=11 // pred_check_branch
          %223 = sbr.rel (%p221) target = $region16
        $region15: #{dernet_forward.1} parent=11 // pred_region
          %s224 = smul.u32 2, %s25
          %p225 = scmp.lt.s32.totalorder %s224, 1
          %s226 = scalar_select %p225, %s224, 1
          %s227 = smul.addr %s226, 2
          %s228 = smul.addr %s227, 4
          %s229 = scalar_lea.vmem %s0, %s228
          %s230 = smul.u32 2, %s25
        $region16: #{dernet_forward.1} parent=11 // pred_fallthru
          _
        // Predicated region
        $region17: #{dernet_forward.1} parent=11 // pred_check
          %p231 = pneg %p178
        $region18: #{dernet_forward.1} parent=11 // pred_check_branch
          %233 = sbr.rel (%p231) target = $region20
        $region19: #{dernet_forward.1} parent=11 // pred_region
          _
        $region20: #{dernet_forward.1} parent=11 // pred_fallthru
          _
      $region12: #{dernet_forward.1} parent=5 // pred_fallthru
        _
      %p234 = scmp.lt.s32.totalorder %s15, 2
      // Predicated region
      $region21: #{dernet_forward.1} parent=5 // pred_check
        %p235 = pneg %p234
      $region22: #{dernet_forward.1} parent=5 // pred_check_branch
        %237 = sbr.rel (%p235) target = $region24
      $region23: #{dernet_forward.1} parent=5 // pred_region
        // Predicated region
        $region25: #{dernet_forward.1} parent=23 // pred_check
          %p238 = pneg %p73
        $region26: #{dernet_forward.1} parent=23 // pred_check_branch
          %240 = sbr.rel (%p238) target = $region28
        $region27: #{dernet_forward.1} parent=23 // pred_region
          %p241 = scmp.lt.s32.totalorder %s22, 1
          %s242 = scalar_select %p241, %s22, 1
          %s243 = smul.addr %s242, 24
          %s244 = smul.addr %s243, 4
          %s245 = scalar_lea.vmem %s1, %s244
        $region28: #{dernet_forward.1} parent=23 // pred_fallthru
          _
        // Predicated region
        $region29: #{dernet_forward.1} parent=23 // pred_check
          %p246 = pneg %p99
        $region30: #{dernet_forward.1} parent=23 // pred_check_branch
          %248 = sbr.rel (%p246) target = $region32
        $region31: #{dernet_forward.1} parent=23 // pred_region
          %p249 = scmp.lt.s32.totalorder %s22, 1
          %s250 = scalar_select %p249, %s22, 1
          %s251 = scalar_lea.vmem %s2, %s250
        $region32: #{dernet_forward.1} parent=23 // pred_fallthru
          _
        // Predicated region
        $region33: #{dernet_forward.1} parent=23 // pred_check
          %p252 = pneg %p125
        $region34: #{dernet_forward.1} parent=23 // pred_check_branch
          %254 = sbr.rel (%p252) target = $region36
        $region35: #{dernet_forward.1} parent=23 // pred_region
          %s255 = sand.u32 %s115, 1
          %s256 = scalar_lea.sflag [#allocation5], %s255
          %s257 = sand.u32 %s115, 1
          %s258 = smul.addr %s257, 384
          %s259 = scalar_lea.vmem [#allocation4], %s258
          %261 = vsyncadd %s256, 0
          %s262 = smul.addr %s22, 96
          %s263 = smul.addr %s262, 4
          %s264 = scalar_lea.hbm %s3, %s263
          %s265 = sshll.u32 %s264, 4
          %s266 = int_to_ptr.hbm [resolvable:$true] %s265
          %s267 = sshll.u32 %s259, 4
          %s268 = int_to_ptr.vmem [resolvable:$true] %s267
          %273 = dma.hbm_to_vmem [thread:$0]  %s266, 6144, %s268, %s256, 128, 128, 8
        $region36: #{dernet_forward.1} parent=23 // pred_fallthru
          _
        // Predicated region
        $region37: #{dernet_forward.1} parent=23 // pred_check
          %p274 = pneg %p151
        $region38: #{dernet_forward.1} parent=23 // pred_check_branch
          %276 = sbr.rel (%p274) target = $region40
        $region39: #{dernet_forward.1} parent=23 // pred_region
          %p277 = scmp.lt.s32.totalorder %s22, 1
          %s278 = scalar_select %p277, %s22, 1
          %s279 = smul.addr %s278, 2
          %s280 = scalar_lea.vmem %s4, %s279
        $region40: #{dernet_forward.1} parent=23 // pred_fallthru
          _
      $region24: #{dernet_forward.1} parent=5 // pred_fallthru
        _
      %p281 = scmp.le.s32.totalorder 1, %s15
      %p282 = scmp.lt.s32.totalorder %s15, 3
      %p283 = pnand %p281, %p282
      %p284 = pneg %p283
      // Predicated region
      $region41: #{dernet_forward.1} parent=5 // pred_check
        _
      $region42: #{dernet_forward.1} parent=5 // pred_check_branch
        %286 = sbr.rel (%p283) target = $region44
      $region43: #{dernet_forward.1} parent=5 // pred_region
        %s287 = ssub.s32 %s15, 1
        %s288 = sand.u32 %s118, 1
        %s289 = scalar_lea.sflag [#allocation5], %s288
        %s290 = sand.u32 %s118, 1
        %s291 = smul.addr %s290, 384
        %s292 = scalar_lea.vmem [#allocation4], %s291
        // Predicated region
        $region45: #{dernet_forward.1} parent=43 // pred_check
          %p293 = pneg %p131
        $region46: #{dernet_forward.1} parent=43 // pred_check_branch
          %295 = sbr.rel (%p293) target = $region48
        $region47: #{dernet_forward.1} parent=43 // pred_region
          %297 = dma.done %s289, 6144
        $region48: #{dernet_forward.1} parent=43 // pred_fallthru
          _
        %s298 = smul.u32 2, %s25
        %p299 = scmp.lt.s32.totalorder %s298, 1
        %s300 = scalar_select %p299, %s298, 1
        %s301 = smul.addr %s300, 2
        %s302 = smul.addr %s301, 4
        %s303 = scalar_lea.vmem %s0, %s302
        %p304 = pneg %p53
        %p305 = pneg %p50
        %p306 = scmp.lt.s32.totalorder %s24, 1
        %s307 = scalar_select %p306, %s24, 1
        %s308 = smul.addr %s307, 24
        %s309 = smul.addr %s308, 4
        %s310 = scalar_lea.vmem %s1, %s309
        %p311 = pneg %p79
        %p312 = pneg %p76
        %p313 = scmp.lt.s32.totalorder %s24, 1
        %s314 = scalar_select %p313, %s24, 1
        %s315 = scalar_lea.vmem %s2, %s314
        %p316 = pneg %p105
        %p317 = pneg %p102
        %s318 = sand.u32 %s118, 1
        %s319 = scalar_lea.sflag [#allocation5], %s318
        %s320 = sand.u32 %s118, 1
        %s321 = smul.addr %s320, 384
        %s322 = scalar_lea.vmem [#allocation4], %s321
        %p323 = pneg %p131
        %p324 = pneg %p128
        %p325 = scmp.lt.s32.totalorder %s24, 1
        %s326 = scalar_select %p325, %s24, 1
        %s327 = smul.addr %s326, 2
        %s328 = scalar_lea.vmem %s4, %s327
        %p329 = pneg %p157
        %p330 = pneg %p154
        %p331 = pneg %p178
        %p332 = pneg %p175
        %p333 = pneg %p206
        %p334 = pneg %p203
        %p335 = scmp.lt.s32.totalorder %s24, 1
        %s336 = scalar_select %p335, %s24, 1
        %p337 = scmp.lt.s32.totalorder %s25, 0
        %s338 = scalar_select %p337, %s25, 0
        %s339 = sadd.s32 %s338, %s336
        %s340 = smul.addr %s339, 2
        %s341 = scalar_lea.vmem %s6, %s340
        %s342 = smul.u32 2, %s25
        %p343 = scmp.lt.s32.totalorder %s342, 1
        %s344 = scalar_select %p343, %s342, 1
        %s345 = smul.addr %s344, 2
        %s346 = smul.addr %s345, 4
        %s347 = scalar_lea.vmem %s0, %s346
        %s348 = smul.u32 2, %s25
        %p349 = scmp.lt.s32.totalorder %s24, 1
        %s350 = scalar_select %p349, %s24, 1
        %s351 = smul.addr %s350, 24
        %s352 = smul.addr %s351, 4
        %s353 = scalar_lea.vmem %s1, %s352
        %p354 = scmp.lt.s32.totalorder %s24, 1
        %s355 = scalar_select %p354, %s24, 1
        %s356 = scalar_lea.vmem %s2, %s355
        %p357 = scmp.lt.s32.totalorder %s24, 1
        %s358 = scalar_select %p357, %s24, 1
        %s359 = smul.addr %s358, 2
        %s360 = scalar_lea.vmem %s4, %s359
        %p361 = scmp.lt.s32.totalorder %s24, 1
        %s362 = scalar_select %p361, %s24, 1
        %p363 = scmp.lt.s32.totalorder %s25, 0
        %s364 = scalar_select %p363, %s25, 0
        %s365 = sadd.s32 %s364, %s362
        %s366 = smul.addr %s365, 2
        %s367 = scalar_lea.vmem %s6, %s366
        %vm369 = vcmask 516096
        %vm370 = vsmask.f32 256
        %vm371 = vmand %vm369, %vm370
        %v372 = vld [vmem:[#allocation2] sm:$0x1]
        %v373 = vsel %vm371, 0, %v372
        %374 = vst [vmem:[#allocation2] sm:$0x1] %v373
        %v375 = vld [vmem:[#allocation2 + $0xc] sm:$0x1]
        %v376 = vsel %vm371, 0, %v375
        %377 = vst [vmem:[#allocation2 + $0xc] sm:$0x1] %v376
        %vm378 = vsmask.f32 7938
        %vm379 = vmand %vm369, %vm378
        %v380 = vld [vmem:[#allocation2 + $0x8] sm:$0x1]
        %v381 = vsel %vm379, 0, %v380
        %382 = vst [vmem:[#allocation2 + $0x8] sm:$0x1] %v381
        %v383 = vld [vmem:[#allocation2 + $0x14] sm:$0x1]
        %v384 = vsel %vm379, 0, %v383
        %385 = vst [vmem:[#allocation2 + $0x14] sm:$0x1] %v384
        %v386 = vld [vmem:[%s347] sm:$0xf]
        %v387 = vld [vmem:[%s347 + $0x4] sm:$0xf]
        %v388 = vld [vmem:[%s347 + $0x8] sm:$0xf]
        %v389 = vld [vmem:[%s347 + $0xc] sm:$0xf]
        %vm390 = vsmask.f32 4368
        %vm391 = vmor %vm370, %vm390
        %v393 = vshrl.u32 %v386, 16
        %v395 = vrot.slane %v393, 7
        %v396 = vshll.u32 %v386, 16
        %v398 = vor.u32 %v395, %v396
        %v399 = vrot.slane %v395, 4
        %v401 = vshrl.u32 %v387, 16
        %v403 = vrot.slane %v401, 7
        %v404 = vshll.u32 %v387, 16
        %v406 = vor.u32 %v403, %v404
        %v407 = vsel %vm391, %v399, %v406
        %v408 = vrot.slane %v403, 4
        %v410 = vshrl.u32 %v388, 16
        %v412 = vrot.slane %v410, 7
        %v413 = vshll.u32 %v388, 16
        %v415 = vor.u32 %v412, %v413
        %v416 = vrot.slane %v412, 4
        %v418 = vshrl.u32 %v389, 16
        %v420 = vrot.slane %v418, 7
        %v421 = vshll.u32 %v389, 16
        %v423 = vor.u32 %v420, %v421
        %v424 = vsel %vm391, %v416, %v423
        %v425 = vrot.slane %v420, 4
        %vm432 = vcmask 519168
        %vm433 = vmand %vm432, %vm378
        %v434 = vld [vmem:[#allocation2] sm:$0xf]
        %v435 = vsel %vm433, %v398, %v434
        %436 = vst [vmem:[#allocation2] sm:$0xf] %v435
        %vm437 = vcmask 519168
        %438 = vst.msk [vmem:[#allocation2 + $0x4] sm:$0xf] %vm437, %v407
        %v439 = vld [vmem:[#allocation2 + $0x8] sm:$0x1]
        %v440 = vsel %vm371, %v408, %v439
        %441 = vst [vmem:[#allocation2 + $0x8] sm:$0x1] %v440
        %v442 = vld [vmem:[#allocation2 + $0xc] sm:$0xf]
        %v443 = vsel %vm433, %v415, %v442
        %444 = vst [vmem:[#allocation2 + $0xc] sm:$0xf] %v443
        %445 = vst.msk [vmem:[#allocation2 + $0x10] sm:$0xf] %vm437, %v424
        %v446 = vld [vmem:[#allocation2 + $0x14] sm:$0x1]
        %v447 = vsel %vm371, %v425, %v446
        %448 = vst [vmem:[#allocation2 + $0x14] sm:$0x1] %v447
        %v449 = vld [vmem:[#allocation2] sm:$0xf]
        %v450 = vld [vmem:[#allocation2 + $0x4] sm:$0xf]
        %v451 = vld [vmem:[#allocation2 + $0x8] sm:$0x1]
        %v452 = vld [vmem:[#allocation2 + $0xc] sm:$0xf]
        %v453 = vld [vmem:[#allocation2 + $0x10] sm:$0xf]
        %v454 = vld [vmem:[#allocation2 + $0x14] sm:$0x1]
        %v455 = vld [vmem:[%s353] sm:$0xf]
        %v456 = vld [vmem:[%s353 + $0x4] sm:$0xf]
        %v457 = vld [vmem:[%s353 + $0x8] sm:$0xf]
        %v458 = vld [vmem:[%s353 + $0xc] sm:$0xf]
        %v459 = vld [vmem:[%s353 + $0x10] sm:$0xf]
        %v460 = vld [vmem:[%s353 + $0x14] sm:$0xf]
        %v461 = vld [vmem:[%s353 + $0x18] sm:$0xf]
        %v462 = vld [vmem:[%s353 + $0x1c] sm:$0xf]
        %vm463 = vsmask.f32 3328
        %vm464 = vsmask.f32 7440
        %vm465 = vmor %vm463, %vm464
        %v467 = vshrl.u32 %v449, 16
        %v469 = vrot.slane %v467, 4
        %v470 = vshll.u32 %v449, 16
        %v472 = vrot.slane %v470, 5
        %v473 = vor.u32 %v469, %v472
        %v474 = vrot.slane %v473, 4
        %v476 = vshll.u32 %v450, 16
        %v478 = vrot.slane %v476, 5
        %v479 = vsel %vm465, %v474, %v478
        %v480 = vshrl.u32 %v450, 16
        %v482 = vrot.slane %v480, 4
        %v483 = vor.u32 %v482, %v478
        %v484 = vrot.slane %v483, 4
        %v486 = vshll.u32 %v451, 16
        %v488 = vrot.slane %v486, 5
        %v489 = vsel %vm465, %v484, %v488
        %v491 = vshrl.u32 %v452, 16
        %v493 = vrot.slane %v491, 4
        %v494 = vshll.u32 %v452, 16
        %v496 = vrot.slane %v494, 5
        %v497 = vor.u32 %v493, %v496
        %v498 = vrot.slane %v497, 4
        %v500 = vshll.u32 %v453, 16
        %v502 = vrot.slane %v500, 5
        %v503 = vsel %vm465, %v498, %v502
        %v504 = vshrl.u32 %v453, 16
        %v506 = vrot.slane %v504, 4
        %v507 = vor.u32 %v506, %v502
        %v508 = vrot.slane %v507, 4
        %v510 = vshll.u32 %v454, 16
        %v512 = vrot.slane %v510, 5
        %v513 = vsel %vm465, %v508, %v512
        %s514 = scalar_lea.vmem %s353, 32
        %v515 = vld [vmem:[%s514] sm:$0xf]
        %v516 = vld [vmem:[%s514 + $0x4] sm:$0xf]
        %v517 = vld [vmem:[%s514 + $0x8] sm:$0xf]
        %v518 = vld [vmem:[%s514 + $0xc] sm:$0xf]
        %v519 = vld [vmem:[%s514 + $0x10] sm:$0xf]
        %v520 = vld [vmem:[%s514 + $0x14] sm:$0xf]
        %v521 = vld [vmem:[%s514 + $0x18] sm:$0xf]
        %v522 = vld [vmem:[%s514 + $0x1c] sm:$0xf]
        %v523 = vunpack.c.l.b16 %v479
        %v524 = vunpack.c.l.b16 %v489
        %v525 = vunpack.c.l.b16 %v503
        %v526 = vunpack.c.l.b16 %v513
        %v527 = vpack.c.b16 %v524, %v523
        %v528 = vpack.c.b16 %v526, %v525
        %v537 = vunpack.c.l.b16 %v515
        %v538 = vunpack.c.l.b16 %v516
        %v539 = vunpack.c.l.b16 %v517
        %v540 = vunpack.c.l.b16 %v518
        %v541 = vunpack.c.l.b16 %v519
        %v542 = vunpack.c.l.b16 %v520
        %v543 = vunpack.c.l.b16 %v521
        %v544 = vunpack.c.l.b16 %v522
        %v545 = vpack.c.b16 %v538, %v537
        %v546 = vpack.c.b16 %v540, %v539
        %v547 = vpack.c.b16 %v542, %v541
        %v548 = vpack.c.b16 %v544, %v543
        %vm553 = vcmask 523264
        %v555 = vsel %vm553, %v527, 0
        %v558 = vsel %vm553, %v528, 0
        %560 = vmatpush.bf16.msra.mxu0 0
        %561 = vmatpush.bf16.msra.mxu0 0
        %562 = vmatpush.bf16.msra.mxu0 0
        %563 = vmatpush.bf16.msra.mxu0 0
        %564 = vmatpush.bf16.msra.mxu0 %v548
        %565 = vmatpush.bf16.msra.mxu0 %v547
        %566 = vmatpush.bf16.msra.mxu0 %v546
        %567 = vmatpush.bf16.msra.mxu0 %v545
        %568 = vmatmul.bf16.gmra.mxu0 %v555
        %v569 = vpop.f32.mrf.mxu0
        %v570 = vadd.f32 0.0, %v569
        %v571 = vpop.f32.mrf.mxu0
        %v572 = vadd.f32 0.0, %v571
        %573 = vmatmul.bf16.gmra.mxu0 %v558
        %v574 = vpop.f32.mrf.mxu0
        %v575 = vadd.f32 0.0, %v574
        %v576 = vpop.f32.mrf.mxu0
        %v577 = vadd.f32 0.0, %v576
        %578 = vdwg.mxu0
        %v583 = vunpack.c.l.b16 %v449
        %v584 = vunpack.c.l.b16 %v450
        %v585 = vunpack.c.l.b16 %v452
        %v586 = vunpack.c.l.b16 %v453
        %v587 = vpack.c.b16 %v584, %v583
        %v588 = vpack.c.b16 %v586, %v585
        %v597 = vunpack.c.l.b16 %v455
        %v598 = vunpack.c.l.b16 %v456
        %v599 = vunpack.c.l.b16 %v457
        %v600 = vunpack.c.l.b16 %v458
        %v601 = vunpack.c.l.b16 %v459
        %v602 = vunpack.c.l.b16 %v460
        %v603 = vunpack.c.l.b16 %v461
        %v604 = vunpack.c.l.b16 %v462
        %v605 = vpack.c.b16 %v598, %v597
        %v606 = vpack.c.b16 %v600, %v599
        %v607 = vpack.c.b16 %v602, %v601
        %v608 = vpack.c.b16 %v604, %v603
        %v614 = vsel %vm553, %v587, 0
        %v617 = vsel %vm553, %v588, 0
        %619 = vmatpush.bf16.msra.mxu0 0
        %620 = vmatpush.bf16.msra.mxu0 0
        %621 = vmatpush.bf16.msra.mxu0 0
        %622 = vmatpush.bf16.msra.mxu0 0
        %623 = vmatpush.bf16.msra.mxu0 %v608
        %624 = vmatpush.bf16.msra.mxu0 %v607
        %625 = vmatpush.bf16.msra.mxu0 %v606
        %626 = vmatpush.bf16.msra.mxu0 %v605
        %627 = vmatmul.bf16.gmra.mxu0 %v614
        %v628 = vpop.f32.mrf.mxu0
        %v629 = vadd.f32 %v570, %v628
        %v630 = vpop.f32.mrf.mxu0
        %v631 = vadd.f32 %v572, %v630
        %632 = vmatmul.bf16.gmra.mxu0 %v617
        %v633 = vpop.f32.mrf.mxu0
        %v634 = vadd.f32 %v575, %v633
        %v635 = vpop.f32.mrf.mxu0
        %v636 = vadd.f32 %v577, %v635
        %637 = vdwg.mxu0
        %vm640 = vcmask 1042432
        %vm641 = vcmask 1046532
        %vm642 = vmor %vm640, %vm641
        %v643 = vrot.slane %v449, 5
        %v644 = vrot.slane %v643, 4
        %v645 = vrot.slane %v450, 5
        %v646 = vsel %vm642, %v644, %v645
        %v647 = vrot.slane %v645, 4
        %v648 = vrot.slane %v451, 5
        %v649 = vsel %vm642, %v647, %v648
        %v650 = vrot.slane %v452, 5
        %v651 = vrot.slane %v650, 4
        %v652 = vrot.slane %v453, 5
        %v653 = vsel %vm642, %v651, %v652
        %v654 = vrot.slane %v652, 4
        %v655 = vrot.slane %v454, 5
        %v656 = vsel %vm642, %v654, %v655
        %s657 = scalar_lea.vmem %s353, 64
        %v658 = vld [vmem:[%s657] sm:$0xf]
        %v659 = vld [vmem:[%s657 + $0x4] sm:$0xf]
        %v660 = vld [vmem:[%s657 + $0x8] sm:$0xf]
        %v661 = vld [vmem:[%s657 + $0xc] sm:$0xf]
        %v662 = vld [vmem:[%s657 + $0x10] sm:$0xf]
        %v663 = vld [vmem:[%s657 + $0x14] sm:$0xf]
        %v664 = vld [vmem:[%s657 + $0x18] sm:$0xf]
        %v665 = vld [vmem:[%s657 + $0x1c] sm:$0xf]
        %v666 = vunpack.c.l.b16 %v646
        %v667 = vunpack.c.l.b16 %v649
        %v668 = vunpack.c.l.b16 %v653
        %v669 = vunpack.c.l.b16 %v656
        %v670 = vpack.c.b16 %v667, %v666
        %v671 = vpack.c.b16 %v669, %v668
        %v680 = vunpack.c.l.b16 %v658
        %v681 = vunpack.c.l.b16 %v659
        %v682 = vunpack.c.l.b16 %v660
        %v683 = vunpack.c.l.b16 %v661
        %v684 = vunpack.c.l.b16 %v662
        %v685 = vunpack.c.l.b16 %v663
        %v686 = vunpack.c.l.b16 %v664
        %v687 = vunpack.c.l.b16 %v665
        %v688 = vpack.c.b16 %v681, %v680
        %v689 = vpack.c.b16 %v683, %v682
        %v690 = vpack.c.b16 %v685, %v684
        %v691 = vpack.c.b16 %v687, %v686
        %v697 = vsel %vm553, %v670, 0
        %v700 = vsel %vm553, %v671, 0
        %702 = vmatpush.bf16.msra.mxu0 0
        %703 = vmatpush.bf16.msra.mxu0 0
        %704 = vmatpush.bf16.msra.mxu0 0
        %705 = vmatpush.bf16.msra.mxu0 0
        %706 = vmatpush.bf16.msra.mxu0 %v691
        %707 = vmatpush.bf16.msra.mxu0 %v690
        %708 = vmatpush.bf16.msra.mxu0 %v689
        %709 = vmatpush.bf16.msra.mxu0 %v688
        %710 = vmatmul.bf16.gmra.mxu0 %v697
        %v711 = vpop.f32.mrf.mxu0
        %v712 = vadd.f32 0.0, %v711
        %v713 = vpop.f32.mrf.mxu0
        %v714 = vadd.f32 0.0, %v713
        %715 = vmatmul.bf16.gmra.mxu0 %v700
        %v716 = vpop.f32.mrf.mxu0
        %v717 = vadd.f32 0.0, %v716
        %v718 = vpop.f32.mrf.mxu0
        %v719 = vadd.f32 0.0, %v718
        %720 = vdwg.mxu0
        %v721 = vadd.f32 %v629, %v712
        %v722 = vadd.f32 %v631, %v714
        %v723 = vadd.f32 %v634, %v717
        %v724 = vadd.f32 %v636, %v719
        %v725 = vld [vmem:[%s356] sm:$0x1]
        %v727 = vperm.slane %v725, 0
        %v729 = vadd.f32 %v721, %v727
        %v730 = vadd.f32 %v722, %v727
        %v731 = vadd.f32 %v723, %v727
        %v732 = vadd.f32 %v724, %v727
        %v733 = vmax.f32 %v729, 0.0
        %v734 = vmax.f32 %v730, 0.0
        %v735 = vmax.f32 %v731, 0.0
        %v736 = vmax.f32 %v732, 0.0
        %vm737 = vcmask 1040384
        %vm738 = vmand %vm737, %vm370
        %v739 = vld [vmem:[#allocation3] sm:$0x1]
        %v740 = vsel %vm738, 0, %v739
        %741 = vst [vmem:[#allocation3] sm:$0x1] %v740
        %v742 = vld [vmem:[#allocation3 + $0xc] sm:$0x1]
        %v743 = vsel %vm738, 0, %v742
        %744 = vst [vmem:[#allocation3 + $0xc] sm:$0x1] %v743
        %vm745 = vmand %vm737, %vm378
        %v746 = vld [vmem:[#allocation3 + $0x8] sm:$0x1]
        %v747 = vsel %vm745, 0, %v746
        %748 = vst [vmem:[#allocation3 + $0x8] sm:$0x1] %v747
        %v749 = vld [vmem:[#allocation3 + $0x14] sm:$0x1]
        %v750 = vsel %vm745, 0, %v749
        %751 = vst [vmem:[#allocation3 + $0x14] sm:$0x1] %v750
        %v752 = vpack.c.bf16 %v733, %v733
        %v753 = vpack.c.bf16 %v734, %v734
        %v754 = vpack.c.bf16 %v735, %v735
        %v755 = vpack.c.bf16 %v736, %v736
        %v757 = vshrl.u32 %v752, 16
        %v759 = vrot.slane %v757, 7
        %v760 = vshll.u32 %v752, 16
        %v762 = vor.u32 %v759, %v760
        %v763 = vrot.slane %v759, 4
        %v765 = vshrl.u32 %v753, 16
        %v767 = vrot.slane %v765, 7
        %v768 = vshll.u32 %v753, 16
        %v770 = vor.u32 %v767, %v768
        %v771 = vsel %vm391, %v763, %v770
        %v772 = vrot.slane %v767, 4
        %v774 = vshrl.u32 %v754, 16
        %v776 = vrot.slane %v774, 7
        %v777 = vshll.u32 %v754, 16
        %v779 = vor.u32 %v776, %v777
        %v780 = vrot.slane %v776, 4
        %v782 = vshrl.u32 %v755, 16
        %v784 = vrot.slane %v782, 7
        %v785 = vshll.u32 %v755, 16
        %v787 = vor.u32 %v784, %v785
        %v788 = vsel %vm391, %v780, %v787
        %v789 = vrot.slane %v784, 4
        %vm796 = vcmask 1043456
        %vm797 = vmand %vm796, %vm378
        %v798 = vld [vmem:[#allocation3] sm:$0xf]
        %v799 = vsel %vm797, %v762, %v798
        %800 = vst [vmem:[#allocation3] sm:$0xf] %v799
        %801 = vst [vmem:[#allocation3 + $0x4] sm:$0xf] %v771
        %v802 = vld [vmem:[#allocation3 + $0x8] sm:$0x1]
        %v803 = vsel %vm738, %v772, %v802
        %804 = vst [vmem:[#allocation3 + $0x8] sm:$0x1] %v803
        %v805 = vld [vmem:[#allocation3 + $0xc] sm:$0xf]
        %v806 = vsel %vm797, %v779, %v805
        %807 = vst [vmem:[#allocation3 + $0xc] sm:$0xf] %v806
        %808 = vst [vmem:[#allocation3 + $0x10] sm:$0xf] %v788
        %v809 = vld [vmem:[#allocation3 + $0x14] sm:$0x1]
        %v810 = vsel %vm738, %v789, %v809
        %811 = vst [vmem:[#allocation3 + $0x14] sm:$0x1] %v810
        %v812 = vld [vmem:[#allocation3] sm:$0xf]
        %v813 = vld [vmem:[#allocation3 + $0x4] sm:$0xf]
        %v814 = vld [vmem:[#allocation3 + $0x8] sm:$0x1]
        %v815 = vld [vmem:[#allocation3 + $0xc] sm:$0xf]
        %v816 = vld [vmem:[#allocation3 + $0x10] sm:$0xf]
        %v817 = vld [vmem:[#allocation3 + $0x14] sm:$0x1]
        %v818 = vld [vmem:[%s292] sm:$0xff]
        %v819 = vld [vmem:[%s292 + $0x8] sm:$0xff]
        %v820 = vld [vmem:[%s292 + $0x10] sm:$0xff]
        %v821 = vld [vmem:[%s292 + $0x18] sm:$0xff]
        %v822 = vld [vmem:[%s292 + $0x20] sm:$0xff]
        %v823 = vld [vmem:[%s292 + $0x28] sm:$0xff]
        %v824 = vld [vmem:[%s292 + $0x30] sm:$0xff]
        %v825 = vld [vmem:[%s292 + $0x38] sm:$0xff]
        %v826 = vld [vmem:[%s292 + $0x40] sm:$0xff]
        %v827 = vld [vmem:[%s292 + $0x48] sm:$0xff]
        %v828 = vld [vmem:[%s292 + $0x50] sm:$0xff]
        %v829 = vld [vmem:[%s292 + $0x58] sm:$0xff]
        %v830 = vld [vmem:[%s292 + $0x60] sm:$0xff]
        %v831 = vld [vmem:[%s292 + $0x68] sm:$0xff]
        %v832 = vld [vmem:[%s292 + $0x70] sm:$0xff]
        %v833 = vld [vmem:[%s292 + $0x78] sm:$0xff]
        %v835 = vshrl.u32 %v812, 16
        %v837 = vrot.slane %v835, 4
        %v838 = vshll.u32 %v812, 16
        %v840 = vrot.slane %v838, 5
        %v841 = vor.u32 %v837, %v840
        %v842 = vrot.slane %v841, 4
        %v844 = vshll.u32 %v813, 16
        %v846 = vrot.slane %v844, 5
        %v847 = vsel %vm465, %v842, %v846
        %v848 = vshrl.u32 %v813, 16
        %v850 = vrot.slane %v848, 4
        %v851 = vor.u32 %v850, %v846
        %v852 = vrot.slane %v851, 4
        %v854 = vshll.u32 %v814, 16
        %v856 = vrot.slane %v854, 5
        %v857 = vsel %vm465, %v852, %v856
        %v859 = vshrl.u32 %v815, 16
        %v861 = vrot.slane %v859, 4
        %v862 = vshll.u32 %v815, 16
        %v864 = vrot.slane %v862, 5
        %v865 = vor.u32 %v861, %v864
        %v866 = vrot.slane %v865, 4
        %v868 = vshll.u32 %v816, 16
        %v870 = vrot.slane %v868, 5
        %v871 = vsel %vm465, %v866, %v870
        %v872 = vshrl.u32 %v816, 16
        %v874 = vrot.slane %v872, 4
        %v875 = vor.u32 %v874, %v870
        %v876 = vrot.slane %v875, 4
        %v878 = vshll.u32 %v817, 16
        %v880 = vrot.slane %v878, 5
        %v881 = vsel %vm465, %v876, %v880
        %s882 = scalar_lea.vmem %s292, 128 [#allocation4]
        %v883 = vld [vmem:[%s882] sm:$0xff]
        %v884 = vld [vmem:[%s882 + $0x8] sm:$0xff]
        %v885 = vld [vmem:[%s882 + $0x10] sm:$0xff]
        %v886 = vld [vmem:[%s882 + $0x18] sm:$0xff]
        %v887 = vld [vmem:[%s882 + $0x20] sm:$0xff]
        %v888 = vld [vmem:[%s882 + $0x28] sm:$0xff]
        %v889 = vld [vmem:[%s882 + $0x30] sm:$0xff]
        %v890 = vld [vmem:[%s882 + $0x38] sm:$0xff]
        %v891 = vld [vmem:[%s882 + $0x40] sm:$0xff]
        %v892 = vld [vmem:[%s882 + $0x48] sm:$0xff]
        %v893 = vld [vmem:[%s882 + $0x50] sm:$0xff]
        %v894 = vld [vmem:[%s882 + $0x58] sm:$0xff]
        %v895 = vld [vmem:[%s882 + $0x60] sm:$0xff]
        %v896 = vld [vmem:[%s882 + $0x68] sm:$0xff]
        %v897 = vld [vmem:[%s882 + $0x70] sm:$0xff]
        %v898 = vld [vmem:[%s882 + $0x78] sm:$0xff]
        %v899 = vunpack.c.l.b16 %v847
        %v900 = vunpack.c.l.b16 %v857
        %v901 = vunpack.c.l.b16 %v871
        %v902 = vunpack.c.l.b16 %v881
        %v903 = vpack.c.b16 %v900, %v899
        %v904 = vpack.c.b16 %v902, %v901
        %v923 = vunpack.c.l.b16 %v883
        %v924 = vunpack.c.h.b16 %v883
        %v925 = vunpack.c.l.b16 %v884
        %v926 = vunpack.c.h.b16 %v884
        %v927 = vunpack.c.l.b16 %v885
        %v928 = vunpack.c.h.b16 %v885
        %v929 = vunpack.c.l.b16 %v886
        %v930 = vunpack.c.h.b16 %v886
        %v931 = vunpack.c.l.b16 %v887
        %v932 = vunpack.c.h.b16 %v887
        %v933 = vunpack.c.l.b16 %v888
        %v934 = vunpack.c.h.b16 %v888
        %v935 = vunpack.c.l.b16 %v889
        %v936 = vunpack.c.h.b16 %v889
        %v937 = vunpack.c.l.b16 %v890
        %v938 = vunpack.c.h.b16 %v890
        %v939 = vunpack.c.l.b16 %v891
        %v940 = vunpack.c.h.b16 %v891
        %v941 = vunpack.c.l.b16 %v892
        %v942 = vunpack.c.h.b16 %v892
        %v943 = vunpack.c.l.b16 %v893
        %v944 = vunpack.c.h.b16 %v893
        %v945 = vunpack.c.l.b16 %v894
        %v946 = vunpack.c.h.b16 %v894
        %v947 = vunpack.c.l.b16 %v895
        %v948 = vunpack.c.h.b16 %v895
        %v949 = vunpack.c.l.b16 %v896
        %v950 = vunpack.c.h.b16 %v896
        %v951 = vunpack.c.l.b16 %v897
        %v952 = vunpack.c.h.b16 %v897
        %v953 = vunpack.c.l.b16 %v898
        %v954 = vunpack.c.h.b16 %v898
        %v955 = vpack.c.b16 %v925, %v923
        %v956 = vpack.c.b16 %v926, %v924
        %v957 = vpack.c.b16 %v929, %v927
        %v958 = vpack.c.b16 %v930, %v928
        %v959 = vpack.c.b16 %v933, %v931
        %v960 = vpack.c.b16 %v934, %v932
        %v961 = vpack.c.b16 %v937, %v935
        %v962 = vpack.c.b16 %v938, %v936
        %v963 = vpack.c.b16 %v941, %v939
        %v964 = vpack.c.b16 %v942, %v940
        %v965 = vpack.c.b16 %v945, %v943
        %v966 = vpack.c.b16 %v946, %v944
        %v967 = vpack.c.b16 %v949, %v947
        %v968 = vpack.c.b16 %v950, %v948
        %v969 = vpack.c.b16 %v953, %v951
        %v970 = vpack.c.b16 %v954, %v952
        %987 = vmatpush.bf16.msra.mxu0 %v969
        %988 = vmatpush.bf16.msra.mxu0 %v967
        %989 = vmatpush.bf16.msra.mxu0 %v965
        %990 = vmatpush.bf16.msra.mxu0 %v963
        %991 = vmatpush.bf16.msra.mxu0 %v961
        %992 = vmatpush.bf16.msra.mxu0 %v959
        %993 = vmatpush.bf16.msra.mxu0 %v957
        %994 = vmatpush.bf16.msra.mxu0 %v955
        %995 = vmatmul.bf16.gmra.mxu0 %v903
        %v996 = vpop.f32.mrf.mxu0
        %v997 = vadd.f32 0.0, %v996
        %v998 = vpop.f32.mrf.mxu0
        %v999 = vadd.f32 0.0, %v998
        %1000 = vmatmul.bf16.gmra.mxu0 %v904
        %v1001 = vpop.f32.mrf.mxu0
        %v1002 = vadd.f32 0.0, %v1001
        %v1003 = vpop.f32.mrf.mxu0
        %v1004 = vadd.f32 0.0, %v1003
        %1005 = vdwg.mxu0
        %1006 = vmatpush.bf16.msra.mxu0 %v970
        %1007 = vmatpush.bf16.msra.mxu0 %v968
        %1008 = vmatpush.bf16.msra.mxu0 %v966
        %1009 = vmatpush.bf16.msra.mxu0 %v964
        %1010 = vmatpush.bf16.msra.mxu0 %v962
        %1011 = vmatpush.bf16.msra.mxu0 %v960
        %1012 = vmatpush.bf16.msra.mxu0 %v958
        %1013 = vmatpush.bf16.msra.mxu0 %v956
        %1014 = vmatmul.bf16.gmra.mxu0 %v903
        %v1015 = vpop.f32.mrf.mxu0
        %v1016 = vadd.f32 0.0, %v1015
        %v1017 = vpop.f32.mrf.mxu0
        %v1018 = vadd.f32 0.0, %v1017
        %1019 = vmatmul.bf16.gmra.mxu0 %v904
        %v1020 = vpop.f32.mrf.mxu0
        %v1021 = vadd.f32 0.0, %v1020
        %v1022 = vpop.f32.mrf.mxu0
        %v1023 = vadd.f32 0.0, %v1022
        %1024 = vdwg.mxu0
        %v1029 = vunpack.c.l.b16 %v812
        %v1030 = vunpack.c.l.b16 %v813
        %v1031 = vunpack.c.l.b16 %v815
        %v1032 = vunpack.c.l.b16 %v816
        %v1033 = vpack.c.b16 %v1030, %v1029
        %v1034 = vpack.c.b16 %v1032, %v1031
        %v1053 = vunpack.c.l.b16 %v818
        %v1054 = vunpack.c.h.b16 %v818
        %v1055 = vunpack.c.l.b16 %v819
        %v1056 = vunpack.c.h.b16 %v819
        %v1057 = vunpack.c.l.b16 %v820
        %v1058 = vunpack.c.h.b16 %v820
        %v1059 = vunpack.c.l.b16 %v821
        %v1060 = vunpack.c.h.b16 %v821
        %v1061 = vunpack.c.l.b16 %v822
        %v1062 = vunpack.c.h.b16 %v822
        %v1063 = vunpack.c.l.b16 %v823
        %v1064 = vunpack.c.h.b16 %v823
        %v1065 = vunpack.c.l.b16 %v824
        %v1066 = vunpack.c.h.b16 %v824
        %v1067 = vunpack.c.l.b16 %v825
        %v1068 = vunpack.c.h.b16 %v825
        %v1069 = vunpack.c.l.b16 %v826
        %v1070 = vunpack.c.h.b16 %v826
        %v1071 = vunpack.c.l.b16 %v827
        %v1072 = vunpack.c.h.b16 %v827
        %v1073 = vunpack.c.l.b16 %v828
        %v1074 = vunpack.c.h.b16 %v828
        %v1075 = vunpack.c.l.b16 %v829
        %v1076 = vunpack.c.h.b16 %v829
        %v1077 = vunpack.c.l.b16 %v830
        %v1078 = vunpack.c.h.b16 %v830
        %v1079 = vunpack.c.l.b16 %v831
        %v1080 = vunpack.c.h.b16 %v831
        %v1081 = vunpack.c.l.b16 %v832
        %v1082 = vunpack.c.h.b16 %v832
        %v1083 = vunpack.c.l.b16 %v833
        %v1084 = vunpack.c.h.b16 %v833
        %v1085 = vpack.c.b16 %v1055, %v1053
        %v1086 = vpack.c.b16 %v1056, %v1054
        %v1087 = vpack.c.b16 %v1059, %v1057
        %v1088 = vpack.c.b16 %v1060, %v1058
        %v1089 = vpack.c.b16 %v1063, %v1061
        %v1090 = vpack.c.b16 %v1064, %v1062
        %v1091 = vpack.c.b16 %v1067, %v1065
        %v1092 = vpack.c.b16 %v1068, %v1066
        %v1093 = vpack.c.b16 %v1071, %v1069
        %v1094 = vpack.c.b16 %v1072, %v1070
        %v1095 = vpack.c.b16 %v1075, %v1073
        %v1096 = vpack.c.b16 %v1076, %v1074
        %v1097 = vpack.c.b16 %v1079, %v1077
        %v1098 = vpack.c.b16 %v1080, %v1078
        %v1099 = vpack.c.b16 %v1083, %v1081
        %v1100 = vpack.c.b16 %v1084, %v1082
        %1117 = vmatpush.bf16.msra.mxu0 %v1099
        %1118 = vmatpush.bf16.msra.mxu0 %v1097
        %1119 = vmatpush.bf16.msra.mxu0 %v1095
        %1120 = vmatpush.bf16.msra.mxu0 %v1093
        %1121 = vmatpush.bf16.msra.mxu0 %v1091
        %1122 = vmatpush.bf16.msra.mxu0 %v1089
        %1123 = vmatpush.bf16.msra.mxu0 %v1087
        %1124 = vmatpush.bf16.msra.mxu0 %v1085
        %1125 = vmatmul.bf16.gmra.mxu0 %v1033
        %v1126 = vpop.f32.mrf.mxu0
        %v1127 = vadd.f32 %v997, %v1126
        %v1128 = vpop.f32.mrf.mxu0
        %v1129 = vadd.f32 %v999, %v1128
        %1130 = vmatmul.bf16.gmra.mxu0 %v1034
        %v1131 = vpop.f32.mrf.mxu0
        %v1132 = vadd.f32 %v1002, %v1131
        %v1133 = vpop.f32.mrf.mxu0
        %v1134 = vadd.f32 %v1004, %v1133
        %1135 = vdwg.mxu0
        %1136 = vmatpush.bf16.msra.mxu0 %v1100
        %1137 = vmatpush.bf16.msra.mxu0 %v1098
        %1138 = vmatpush.bf16.msra.mxu0 %v1096
        %1139 = vmatpush.bf16.msra.mxu0 %v1094
        %1140 = vmatpush.bf16.msra.mxu0 %v1092
        %1141 = vmatpush.bf16.msra.mxu0 %v1090
        %1142 = vmatpush.bf16.msra.mxu0 %v1088
        %1143 = vmatpush.bf16.msra.mxu0 %v1086
        %1144 = vmatmul.bf16.gmra.mxu0 %v1033
        %v1145 = vpop.f32.mrf.mxu0
        %v1146 = vadd.f32 %v1016, %v1145
        %v1147 = vpop.f32.mrf.mxu0
        %v1148 = vadd.f32 %v1018, %v1147
        %1149 = vmatmul.bf16.gmra.mxu0 %v1034
        %v1150 = vpop.f32.mrf.mxu0
        %v1151 = vadd.f32 %v1021, %v1150
        %v1152 = vpop.f32.mrf.mxu0
        %v1153 = vadd.f32 %v1023, %v1152
        %1154 = vdwg.mxu0
        %v1157 = vrot.slane %v812, 5
        %v1158 = vrot.slane %v1157, 4
        %v1159 = vrot.slane %v813, 5
        %v1160 = vsel %vm642, %v1158, %v1159
        %v1161 = vrot.slane %v1159, 4
        %v1162 = vrot.slane %v814, 5
        %v1163 = vsel %vm642, %v1161, %v1162
        %v1164 = vrot.slane %v815, 5
        %v1165 = vrot.slane %v1164, 4
        %v1166 = vrot.slane %v816, 5
        %v1167 = vsel %vm642, %v1165, %v1166
        %v1168 = vrot.slane %v1166, 4
        %v1169 = vrot.slane %v817, 5
        %v1170 = vsel %vm642, %v1168, %v1169
        %s1171 = scalar_lea.vmem %s292, 256 [#allocation4]
        %v1172 = vld [vmem:[%s1171] sm:$0xff]
        %v1173 = vld [vmem:[%s1171 + $0x8] sm:$0xff]
        %v1174 = vld [vmem:[%s1171 + $0x10] sm:$0xff]
        %v1175 = vld [vmem:[%s1171 + $0x18] sm:$0xff]
        %v1176 = vld [vmem:[%s1171 + $0x20] sm:$0xff]
        %v1177 = vld [vmem:[%s1171 + $0x28] sm:$0xff]
        %v1178 = vld [vmem:[%s1171 + $0x30] sm:$0xff]
        %v1179 = vld [vmem:[%s1171 + $0x38] sm:$0xff]
        %v1180 = vld [vmem:[%s1171 + $0x40] sm:$0xff]
        %v1181 = vld [vmem:[%s1171 + $0x48] sm:$0xff]
        %v1182 = vld [vmem:[%s1171 + $0x50] sm:$0xff]
        %v1183 = vld [vmem:[%s1171 + $0x58] sm:$0xff]
        %v1184 = vld [vmem:[%s1171 + $0x60] sm:$0xff]
        %v1185 = vld [vmem:[%s1171 + $0x68] sm:$0xff]
        %v1186 = vld [vmem:[%s1171 + $0x70] sm:$0xff]
        %v1187 = vld [vmem:[%s1171 + $0x78] sm:$0xff]
        %v1188 = vunpack.c.l.b16 %v1160
        %v1189 = vunpack.c.l.b16 %v1163
        %v1190 = vunpack.c.l.b16 %v1167
        %v1191 = vunpack.c.l.b16 %v1170
        %v1192 = vpack.c.b16 %v1189, %v1188
        %v1193 = vpack.c.b16 %v1191, %v1190
        %v1212 = vunpack.c.l.b16 %v1172
        %v1213 = vunpack.c.h.b16 %v1172
        %v1214 = vunpack.c.l.b16 %v1173
        %v1215 = vunpack.c.h.b16 %v1173
        %v1216 = vunpack.c.l.b16 %v1174
        %v1217 = vunpack.c.h.b16 %v1174
        %v1218 = vunpack.c.l.b16 %v1175
        %v1219 = vunpack.c.h.b16 %v1175
        %v1220 = vunpack.c.l.b16 %v1176
        %v1221 = vunpack.c.h.b16 %v1176
        %v1222 = vunpack.c.l.b16 %v1177
        %v1223 = vunpack.c.h.b16 %v1177
        %v1224 = vunpack.c.l.b16 %v1178
        %v1225 = vunpack.c.h.b16 %v1178
        %v1226 = vunpack.c.l.b16 %v1179
        %v1227 = vunpack.c.h.b16 %v1179
        %v1228 = vunpack.c.l.b16 %v1180
        %v1229 = vunpack.c.h.b16 %v1180
        %v1230 = vunpack.c.l.b16 %v1181
        %v1231 = vunpack.c.h.b16 %v1181
        %v1232 = vunpack.c.l.b16 %v1182
        %v1233 = vunpack.c.h.b16 %v1182
        %v1234 = vunpack.c.l.b16 %v1183
        %v1235 = vunpack.c.h.b16 %v1183
        %v1236 = vunpack.c.l.b16 %v1184
        %v1237 = vunpack.c.h.b16 %v1184
        %v1238 = vunpack.c.l.b16 %v1185
        %v1239 = vunpack.c.h.b16 %v1185
        %v1240 = vunpack.c.l.b16 %v1186
        %v1241 = vunpack.c.h.b16 %v1186
        %v1242 = vunpack.c.l.b16 %v1187
        %v1243 = vunpack.c.h.b16 %v1187
        %v1244 = vpack.c.b16 %v1214, %v1212
        %v1245 = vpack.c.b16 %v1215, %v1213
        %v1246 = vpack.c.b16 %v1218, %v1216
        %v1247 = vpack.c.b16 %v1219, %v1217
        %v1248 = vpack.c.b16 %v1222, %v1220
        %v1249 = vpack.c.b16 %v1223, %v1221
        %v1250 = vpack.c.b16 %v1226, %v1224
        %v1251 = vpack.c.b16 %v1227, %v1225
        %v1252 = vpack.c.b16 %v1230, %v1228
        %v1253 = vpack.c.b16 %v1231, %v1229
        %v1254 = vpack.c.b16 %v1234, %v1232
        %v1255 = vpack.c.b16 %v1235, %v1233
        %v1256 = vpack.c.b16 %v1238, %v1236
        %v1257 = vpack.c.b16 %v1239, %v1237
        %v1258 = vpack.c.b16 %v1242, %v1240
        %v1259 = vpack.c.b16 %v1243, %v1241
        %1276 = vmatpush.bf16.msra.mxu0 %v1258
        %1277 = vmatpush.bf16.msra.mxu0 %v1256
        %1278 = vmatpush.bf16.msra.mxu0 %v1254
        %1279 = vmatpush.bf16.msra.mxu0 %v1252
        %1280 = vmatpush.bf16.msra.mxu0 %v1250
        %1281 = vmatpush.bf16.msra.mxu0 %v1248
        %1282 = vmatpush.bf16.msra.mxu0 %v1246
        %1283 = vmatpush.bf16.msra.mxu0 %v1244
        %1284 = vmatmul.bf16.gmra.mxu0 %v1192
        %v1285 = vpop.f32.mrf.mxu0
        %v1286 = vadd.f32 0.0, %v1285
        %v1287 = vpop.f32.mrf.mxu0
        %v1288 = vadd.f32 0.0, %v1287
        %1289 = vmatmul.bf16.gmra.mxu0 %v1193
        %v1290 = vpop.f32.mrf.mxu0
        %v1291 = vadd.f32 0.0, %v1290
        %v1292 = vpop.f32.mrf.mxu0
        %v1293 = vadd.f32 0.0, %v1292
        %1294 = vdwg.mxu0
        %1295 = vmatpush.bf16.msra.mxu0 %v1259
        %1296 = vmatpush.bf16.msra.mxu0 %v1257
        %1297 = vmatpush.bf16.msra.mxu0 %v1255
        %1298 = vmatpush.bf16.msra.mxu0 %v1253
        %1299 = vmatpush.bf16.msra.mxu0 %v1251
        %1300 = vmatpush.bf16.msra.mxu0 %v1249
        %1301 = vmatpush.bf16.msra.mxu0 %v1247
        %1302 = vmatpush.bf16.msra.mxu0 %v1245
        %1303 = vmatmul.bf16.gmra.mxu0 %v1192
        %v1304 = vpop.f32.mrf.mxu0
        %v1305 = vadd.f32 0.0, %v1304
        %v1306 = vpop.f32.mrf.mxu0
        %v1307 = vadd.f32 0.0, %v1306
        %1308 = vmatmul.bf16.gmra.mxu0 %v1193
        %v1309 = vpop.f32.mrf.mxu0
        %v1310 = vadd.f32 0.0, %v1309
        %v1311 = vpop.f32.mrf.mxu0
        %v1312 = vadd.f32 0.0, %v1311
        %1313 = vdwg.mxu0
        %v1314 = vadd.f32 %v1127, %v1286
        %v1315 = vadd.f32 %v1146, %v1305
        %v1316 = vadd.f32 %v1129, %v1288
        %v1317 = vadd.f32 %v1148, %v1307
        %v1318 = vadd.f32 %v1132, %v1291
        %v1319 = vadd.f32 %v1151, %v1310
        %v1320 = vadd.f32 %v1134, %v1293
        %v1321 = vadd.f32 %v1153, %v1312
        %v1322 = vld [vmem:[%s360] sm:$0x3]
        %v1324 = vperm.slane %v1322, 0
        %v1325 = vperm.slane %v1322, 1
        %v1328 = vadd.f32 %v1314, %v1324
        %v1329 = vadd.f32 %v1315, %v1325
        %v1330 = vadd.f32 %v1316, %v1324
        %v1331 = vadd.f32 %v1317, %v1325
        %v1332 = vadd.f32 %v1318, %v1324
        %v1333 = vadd.f32 %v1319, %v1325
        %v1334 = vadd.f32 %v1320, %v1324
        %v1335 = vadd.f32 %v1321, %v1325
        %v1336 = vmax.f32 %v1328, 0.0
        %v1337 = vmax.f32 %v1329, 0.0
        %v1338 = vmax.f32 %v1330, 0.0
        %v1339 = vmax.f32 %v1331, 0.0
        %v1340 = vmax.f32 %v1332, 0.0
        %v1341 = vmax.f32 %v1333, 0.0
        %v1342 = vmax.f32 %v1334, 0.0
        %v1343 = vmax.f32 %v1335, 0.0
        %v1344 = vld [vmem:[%s5] sm:$0xff]
        %v1345 = vld [vmem:[%s5 + $0x8] sm:$0xff]
        %v1346 = vld [vmem:[%s5 + $0x10] sm:$0xff]
        %v1347 = vld [vmem:[%s5 + $0x18] sm:$0xff]
        %v1348 = vld [vmem:[%s5 + $0x20] sm:$0xff]
        %v1349 = vld [vmem:[%s5 + $0x28] sm:$0xff]
        %v1350 = vld [vmem:[%s5 + $0x30] sm:$0xff]
        %v1351 = vld [vmem:[%s5 + $0x38] sm:$0xff]
        %v1352 = vld [vmem:[%s5 + $0x40] sm:$0xff]
        %v1353 = vld [vmem:[%s5 + $0x48] sm:$0xff]
        %v1354 = vld [vmem:[%s5 + $0x50] sm:$0xff]
        %v1355 = vld [vmem:[%s5 + $0x58] sm:$0xff]
        %v1356 = vld [vmem:[%s5 + $0x60] sm:$0xff]
        %v1357 = vld [vmem:[%s5 + $0x68] sm:$0xff]
        %v1358 = vld [vmem:[%s5 + $0x70] sm:$0xff]
        %v1359 = vld [vmem:[%s5 + $0x78] sm:$0xff]
        %v1360 = vld [vmem:[%s5 + $0x80] sm:$0xff]
        %v1361 = vld [vmem:[%s5 + $0x88] sm:$0xff]
        %v1362 = vld [vmem:[%s5 + $0x90] sm:$0xff]
        %v1363 = vld [vmem:[%s5 + $0x98] sm:$0xff]
        %v1364 = vld [vmem:[%s5 + $0xa0] sm:$0xff]
        %v1365 = vld [vmem:[%s5 + $0xa8] sm:$0xff]
        %v1366 = vld [vmem:[%s5 + $0xb0] sm:$0xff]
        %v1367 = vld [vmem:[%s5 + $0xb8] sm:$0xff]
        %v1368 = vld [vmem:[%s5 + $0xc0] sm:$0xff]
        %v1369 = vld [vmem:[%s5 + $0xc8] sm:$0xff]
        %v1370 = vld [vmem:[%s5 + $0xd0] sm:$0xff]
        %v1371 = vld [vmem:[%s5 + $0xd8] sm:$0xff]
        %v1372 = vld [vmem:[%s5 + $0xe0] sm:$0xff]
        %v1373 = vld [vmem:[%s5 + $0xe8] sm:$0xff]
        %v1374 = vld [vmem:[%s5 + $0xf0] sm:$0xff]
        %v1375 = vld [vmem:[%s5 + $0xf8] sm:$0xff]
        %1376 = vmatpush.msra.mxu0 %v1359
        %1377 = vmatpush.msra.mxu0 %v1358
        %1378 = vmatpush.msra.mxu0 %v1357
        %1379 = vmatpush.msra.mxu0 %v1356
        %1380 = vmatpush.msra.mxu0 %v1355
        %1381 = vmatpush.msra.mxu0 %v1354
        %1382 = vmatpush.msra.mxu0 %v1353
        %1383 = vmatpush.msra.mxu0 %v1352
        %1384 = vmatpush.msra.mxu0 %v1351
        %1385 = vmatpush.msra.mxu0 %v1350
        %1386 = vmatpush.msra.mxu0 %v1349
        %1387 = vmatpush.msra.mxu0 %v1348
        %1388 = vmatpush.msra.mxu0 %v1347
        %1389 = vmatpush.msra.mxu0 %v1346
        %1390 = vmatpush.msra.mxu0 %v1345
        %1391 = vmatpush.msra.mxu0 %v1344
        %1392 = vmatmul.f32.gmra.mxu0 %v1336
        %v1393 = vpop.f32.mrf.mxu0
        %v1394 = vadd.f32 0.0, %v1393
        %1395 = vmatmul.f32.gmra.mxu0 %v1338
        %v1396 = vpop.f32.mrf.mxu0
        %v1397 = vadd.f32 0.0, %v1396
        %1398 = vmatmul.f32.gmra.mxu0 %v1340
        %v1399 = vpop.f32.mrf.mxu0
        %v1400 = vadd.f32 0.0, %v1399
        %1401 = vmatmul.f32.gmra.mxu0 %v1342
        %v1402 = vpop.f32.mrf.mxu0
        %v1403 = vadd.f32 0.0, %v1402
        %1404 = vdwg.mxu0
        %1405 = vmatpush.msra.mxu0 %v1375
        %1406 = vmatpush.msra.mxu0 %v1374
        %1407 = vmatpush.msra.mxu0 %v1373
        %1408 = vmatpush.msra.mxu0 %v1372
        %1409 = vmatpush.msra.mxu0 %v1371
        %1410 = vmatpush.msra.mxu0 %v1370
        %1411 = vmatpush.msra.mxu0 %v1369
        %1412 = vmatpush.msra.mxu0 %v1368
        %1413 = vmatpush.msra.mxu0 %v1367
        %1414 = vmatpush.msra.mxu0 %v1366
        %1415 = vmatpush.msra.mxu0 %v1365
        %1416 = vmatpush.msra.mxu0 %v1364
        %1417 = vmatpush.msra.mxu0 %v1363
        %1418 = vmatpush.msra.mxu0 %v1362
        %1419 = vmatpush.msra.mxu0 %v1361
        %1420 = vmatpush.msra.mxu0 %v1360
        %1421 = vmatmul.f32.gmra.mxu0 %v1337
        %v1422 = vpop.f32.mrf.mxu0
        %v1423 = vadd.f32 %v1394, %v1422
        %1424 = vmatmul.f32.gmra.mxu0 %v1339
        %v1425 = vpop.f32.mrf.mxu0
        %v1426 = vadd.f32 %v1397, %v1425
        %1427 = vmatmul.f32.gmra.mxu0 %v1341
        %v1428 = vpop.f32.mrf.mxu0
        %v1429 = vadd.f32 %v1400, %v1428
        %1430 = vmatmul.f32.gmra.mxu0 %v1343
        %v1431 = vpop.f32.mrf.mxu0
        %v1432 = vadd.f32 %v1403, %v1431
        %1433 = vdwg.mxu0
        %vm1434 = vcmask 130048
        %v1435 = vsel %vm1434, %v1423, 0.0
        %v1436 = vsel %vm1434, %v1426, 0.0
        %v1437 = vadd.f32 %v1435, %v1436
        %v1438 = vrot.slane %v1437, 4
        %v1439 = vadd.f32 %v1437, %v1438
        %v1440 = vrot.slane %v1439, 2
        %v1441 = vadd.f32 %v1439, %v1440
        %v1442 = vrot.slane %v1441, 1
        %v1443 = vadd.f32 %v1441, %v1442
        %v1444 = vsel %vm1434, %v1429, 0.0
        %v1445 = vsel %vm1434, %v1432, 0.0
        %v1446 = vadd.f32 %v1444, %v1445
        %v1447 = vrot.slane %v1446, 4
        %v1448 = vadd.f32 %v1446, %v1447
        %v1449 = vrot.slane %v1448, 2
        %v1450 = vadd.f32 %v1448, %v1449
        %v1451 = vrot.slane %v1450, 1
        %v1452 = vadd.f32 %v1450, %v1451
        %vm1455 = vcmask 1041409
        %v1456 = vsel %vm1455, %v1452, %v1443
        %vm1458 = vcmask 123904
        %1459 = vst.msk [vmem:[%s367] sm:$0x3] %vm1458, %v1456
        %p1460 = scmp.lt.s32.totalorder %s24, 1
        %s1461 = scalar_select %p1460, %s24, 1
        %p1462 = scmp.lt.s32.totalorder %s25, 0
        %s1463 = scalar_select %p1462, %s25, 0
        %s1464 = sadd.s32 %s1463, %s1461
        %s1465 = smul.addr %s1464, 2
        %s1466 = scalar_lea.vmem %s6, %s1465
        // Predicated region
        $region49: #{dernet_forward.1} parent=43 // pred_check
          %p1467 = pneg %p203
        $region50: #{dernet_forward.1} parent=43 // pred_check_branch
          %1469 = sbr.rel (%p1467) target = $region52
        $region51: #{dernet_forward.1} parent=43 // pred_region
          _
        $region52: #{dernet_forward.1} parent=43 // pred_fallthru
          _
      $region44: #{dernet_forward.1} parent=5 // pred_fallthru
        _
      %p1470 = scmp.le.s32.totalorder 2, %s15
      // Predicated region
      $region53: #{dernet_forward.1} parent=5 // pred_check
        %p1471 = pneg %p1470
      $region54: #{dernet_forward.1} parent=5 // pred_check_branch
        %1473 = sbr.rel (%p1471) target = $region56
      $region55: #{dernet_forward.1} parent=5 // pred_region
        %s1474 = ssub.s32 %s15, 2
        // Predicated region
        $region57: #{dernet_forward.1} parent=55 // pred_check
          %p1475 = pneg %p209
        $region58: #{dernet_forward.1} parent=55 // pred_check_branch
          %1477 = sbr.rel (%p1475) target = $region60
        $region59: #{dernet_forward.1} parent=55 // pred_region
          %p1478 = scmp.lt.s32.totalorder %s26, 1
          %s1479 = scalar_select %p1478, %s26, 1
          %p1480 = scmp.lt.s32.totalorder %s27, 0
          %s1481 = scalar_select %p1480, %s27, 0
          %s1482 = sadd.s32 %s1481, %s1479
          %s1483 = smul.addr %s1482, 2
          %s1484 = scalar_lea.vmem %s6, %s1483
        $region60: #{dernet_forward.1} parent=55 // pred_fallthru
          _
      $region56: #{dernet_forward.1} parent=5 // pred_fallthru
        _
    $region6: #{dernet_forward.1} parent=1 // loop_footer
      %s19 = sadd.s32 1, %s15
    $region7: #{dernet_forward.1} parent=1 // loop_footer_branch
      %14 = sbr.rel target = $region3
    $region8: #{dernet_forward.1} parent=1 // loop_exit
      _
    %1485 = vsyncpa [#allocation5], 1
    %s1486 = scalar_lea.sflag [#allocation5], 1
    %1487 = vsyncpa %s1486, 1

</llo_original>
